<compile_context>
chip_gen: v5e
topology: v5e:2x2
jax: 0.10.0
libtpu: 0.0.40
codegen_flags: <defaults>
</compile_context>

<pallas_src>
import jax
import jax.numpy as jnp
from jax.experimental import pallas as pl
from jax.experimental.pallas import tpu as pltpu


def _round_up(x, m):
    return (x + m - 1) // m * m


def _energy_kernel(x_ref, w1_ref, b1_ref, w2_ref, b2_ref, o_ref):
    # x_ref:  (TB, D)  f32 batch tile, streamed/pipelined over the grid
    # w1_ref: (D, Hp)  bf16, VMEM-resident (constant index_map -> fetched once)
    # b1_ref: (1, Hp)  f32, resident
    # w2_ref: (1, Hp)  f32 second-layer weights as a row vector, resident
    # b2_ref: (1,)     f32 scalar in SMEM
    # o_ref:  (1, TB)  f32 lane-dense per-sample energies
    x = x_ref[...].astype(jnp.bfloat16)              # in-kernel cast (VPU, hidden under DMA)
    h = jnp.dot(x, w1_ref[...], preferred_element_type=jnp.float32)
    h = jnp.maximum(h + b1_ref[...], 0.0)            # f32 bias + ReLU (no bf16 VPU on v5e)
    # (TB,Hp)@(Hp,1) would use <1% of the MXU; do VPU mul + lane reduction instead.
    e = jnp.sum(h * w2_ref[...], axis=-1) + b2_ref[0]    # (TB,)
    o_ref[...] = e.reshape(1, -1).astype(o_ref.dtype)    # lane-dense store


def energy_mlp_pallas(x_flat, w1_bf16, b1, w2_row, b2_scalar, *, tile=None,
                      vmem_stream_budget=32 << 20):
    """MLP energy head: 1-D grid over batch tiles, weights VMEM-resident."""
    B, D = x_flat.shape
    Hp = w1_bf16.shape[1]
    itemsize = jnp.dtype(x_flat.dtype).itemsize

    if tile is None:
        # Largest 128-multiple batch tile whose double-buffered x stream fits the
        # budget (conservative so it also fits v7x's 64 MiB physical VMEM), capped
        # at 2048 and at the (128-rounded) batch so tiny batches don't burn
        # compute on undefined padding rows.
        max_rows = max(128, vmem_stream_budget // (2 * D * itemsize))
        tile = min(2048, (max_rows // 128) * 128, _round_up(max(B, 1), 128))

    num_tiles = pl.cdiv(B, tile)
    B_out = num_tiles * tile          # only the tiny output is padded; x is NOT padded/copied

    if num_tiles >= 2 and num_tiles % 2 == 0:
        # v7x megacore: actually split batch tiles across the 2 TensorCores.
        dim_sem = (pltpu.CORE_PARALLEL,)
    else:
        dim_sem = (pltpu.PARALLEL,)

    cost = pl.CostEstimate(
        flops=2 * B_out * D * Hp + 4 * B_out * Hp,
        transcendentals=0,
        bytes_accessed=B * D * itemsize          # x stream (native dtype, valid rows only)
        + D * Hp * 2                             # resident bf16 W1 (one-time)
        + 2 * Hp * 4 + 4                         # b1, w2 row, b2 scalar
        + B_out * 4,                             # lane-dense output row
    )

    out_row = pl.pallas_call(
        _energy_kernel,
        out_shape=jax.ShapeDtypeStruct((1, B_out), jnp.float32),
        grid=(num_tiles,),
        in_specs=[
            pl.BlockSpec((tile, D), lambda i: (i, 0)),     # streamed batch tiles (last one partial)
            pl.BlockSpec((D, Hp), lambda i: (0, 0)),       # resident W1 (bf16)
            pl.BlockSpec((1, Hp), lambda i: (0, 0)),       # resident b1
            pl.BlockSpec((1, Hp), lambda i: (0, 0)),       # resident w2 row
            pl.BlockSpec(memory_space=pltpu.MemorySpace.SMEM),  # b2 scalar
        ],
        out_specs=pl.BlockSpec((1, tile), lambda i: (0, i)),
        compiler_params=pltpu.CompilerParams(
            dimension_semantics=dim_sem,
            vmem_limit_bytes=48 << 20,           # safe on v7x (64 MiB); ample on v5e/v6e
        ),
        cost_estimate=cost,
    )(x_flat, w1_bf16, b1, w2_row, b2_scalar)

    return out_row.reshape(B_out)[:B].reshape(B, 1)


class EnergyPallas:
    """JAX/Pallas analogue of torchsupport's Energy wrapper.

    forward(data, *args) delegates to the wrapped energy network, exactly like
    the PyTorch module.  keep_rate / reset bookkeeping are host-side Python and
    not part of forward.
    """

    def __init__(self, shape=(4, 16, 16), hidden=32, keep_rate=0.95, seed=0):
        self.keep_rate = keep_rate
        self.shape = shape                                 # (C, H, W) per-sample
        C, Hh, Ww = shape
        D = C * Hh * Ww
        k0, k1, k2 = jax.random.split(jax.random.PRNGKey(seed), 3)
        lim1 = 1.0 / jnp.sqrt(D)
        lim2 = 1.0 / jnp.sqrt(hidden)
        # Reference (f32) parameters, PyTorch-Linear-like init scale.
        self.w1 = jax.random.uniform(k0, (D, hidden), jnp.float32, -lim1, lim1)
        self.b1 = jax.random.uniform(k1, (1, hidden), jnp.float32, -lim1, lim1)
        self.w2 = jax.random.uniform(k2, (hidden, 1), jnp.float32, -lim2, lim2)
        self.b2 = jnp.zeros((1, 1), jnp.float32)
        # Kernel-side parameters: hidden zero-padded to exactly one 128-lane tile
        # (no benefit padding further — kernel is HBM-bound); W1 stored bf16.
        # Zero padding contributes exactly 0 to the energy, so semantics hold.
        Hp = _round_up(hidden, 128)
        pad = Hp - hidden
        self._w1_k = jnp.pad(self.w1, ((0, 0), (0, pad))).astype(jnp.bfloat16)
        self._b1_k = jnp.pad(self.b1, ((0, 0), (0, pad)))              # (1, Hp) f32
        self._w2_k = jnp.pad(self.w2.T, ((0, 0), (0, pad)))            # (1, Hp) f32
        self._b2_k = self.b2.reshape(1)                                # (1,)   f32

    def energy(self, data, *args):
        # data: NCHW (B, C, H, W) -> flatten row-major, same as torch .view(B, -1)
        B = data.shape[0]
        x_flat = data.reshape(B, -1)                       # streamed in native dtype
        return energy_mlp_pallas(x_flat, self._w1_k, self._b1_k,
                                 self._w2_k, self._b2_k)

    def pack_batch(self, batch, args):
        args = args or []
        return (batch, args)

    def unpack_batch(self, batch):
        return batch

    def batch_size(self, batch, args):
        return batch.shape[0]

    # TODO(synk): prepare/reset/recombine_batch resampling and move/push/pull
    # distributed hooks are host-side bookkeeping, not kernel work.

    def forward(self, data, *args):
        # Exact semantics of Energy.forward: delegate to the energy network.
        return self.energy(data, *args)

    __call__ = forward


if __name__ == "__main__":
    B, C, Hh, Ww = 2, 4, 16, 16
    key = jax.random.PRNGKey(0)
    data = jax.random.uniform(key, (B, C, Hh, Ww), jnp.float32)    # NCHW

    mod = EnergyPallas(shape=(C, Hh, Ww), hidden=32, keep_rate=0.95, seed=0)

    out = jax.block_until_ready(mod(data))
    assert out.shape == (B, 1), out.shape

    # Reference with the same bf16 quantization of x / W1 as the kernel's MXU path.
    x = data.reshape(B, -1)
    h_ref = jnp.maximum(
        jnp.dot(x.astype(jnp.bfloat16), mod.w1.astype(jnp.bfloat16),
                preferred_element_type=jnp.float32) + mod.b1, 0.0)
    ref = h_ref @ mod.w2 + mod.b2
    assert jnp.allclose(out, ref, atol=1e-3, rtol=1e-3), (out, ref)

    print("KERNEL_OK")
</pallas_src>

<mosaic_0001>
module attributes {stable_mosaic.version = 11 : i64} {
  func.func @_energy_kernel(%arg0: i32, %arg1: memref<128x1024xf32, #tpu.memory_space<vmem>>, %arg2: memref<1024x128xbf16, #tpu.memory_space<vmem>>, %arg3: memref<1x128xf32, #tpu.memory_space<vmem>>, %arg4: memref<1x128xf32, #tpu.memory_space<vmem>>, %arg5: memref<1xf32, #tpu.memory_space<smem>>, %arg6: memref<1x128xf32, #tpu.memory_space<vmem>>) attributes {dimension_semantics = [#tpu.dimension_semantics<parallel>], iteration_bounds = array<i64: 1>, scalar_prefetch = 0 : i64, scratch_operands = 0 : i64, tpu.core_type = #tpu.core_type<tc>, window_params = [{transform_indices = @transform_0, window_bounds = array<i64: 128, 1024>}, {pipeline_mode = #tpu.pipeline_mode<synchronous>, transform_indices = @transform_1, window_bounds = array<i64: 1024, 128>}, {pipeline_mode = #tpu.pipeline_mode<synchronous>, transform_indices = @transform_2, window_bounds = array<i64: 1, 128>}, {pipeline_mode = #tpu.pipeline_mode<synchronous>, transform_indices = @transform_3, window_bounds = array<i64: 1, 128>}, {transform_indices = @transform_4, window_bounds = array<i64: 1>}, {transform_indices = @transform_5, window_bounds = array<i64: 1, 128>}]} {
    %c0 = arith.constant 0 : index
    %c0_0 = arith.constant 0 : index
    %0 = vector.load %arg1[%c0, %c0_0] : memref<128x1024xf32, #tpu.memory_space<vmem>>, vector<128x1024xf32>
    %1 = arith.truncf %0 : vector<128x1024xf32> to vector<128x1024xbf16>
    %c0_1 = arith.constant 0 : index
    %c0_2 = arith.constant 0 : index
    %2 = vector.load %arg2[%c0_1, %c0_2] : memref<1024x128xbf16, #tpu.memory_space<vmem>>, vector<1024x128xbf16>
    %cst = arith.constant dense<0.000000e+00> : vector<128x128xf32>
    %3 = tpu.matmul %1, %2, %cst {dimension_numbers = #tpu.dot_dimension_numbers<[1], [0], [0], [1], [0, 0, 1, 1], [], []>} : vector<128x1024xbf16>, vector<1024x128xbf16>, vector<128x128xf32> -> vector<128x128xf32>
    %c0_3 = arith.constant 0 : index
    %c0_4 = arith.constant 0 : index
    %4 = vector.load %arg3[%c0_3, %c0_4] : memref<1x128xf32, #tpu.memory_space<vmem>>, vector<1x128xf32>
    %5 = vector.broadcast %4 : vector<1x128xf32> to vector<128x128xf32>
    %6 = arith.addf %3, %5 : vector<128x128xf32>
    %cst_5 = arith.constant 0.000000e+00 : f32
    %7 = vector.broadcast %cst_5 : f32 to vector<128x128xf32>
    %8 = arith.maximumf %6, %7 : vector<128x128xf32>
    %c0_6 = arith.constant 0 : index
    %c0_7 = arith.constant 0 : index
    %9 = vector.load %arg4[%c0_6, %c0_7] : memref<1x128xf32, #tpu.memory_space<vmem>>, vector<1x128xf32>
    %10 = vector.broadcast %9 : vector<1x128xf32> to vector<128x128xf32>
    %11 = arith.mulf %8, %10 : vector<128x128xf32>
    %cst_8 = arith.constant dense<0.000000e+00> : vector<128xf32>
    %12 = vector.multi_reduction <add>, %11, %cst_8 [1] : vector<128x128xf32> to vector<128xf32>
    %c0_9 = arith.constant 0 : index
    %13 = memref.load %arg5[%c0_9] : memref<1xf32, #tpu.memory_space<smem>>
    %14 = vector.broadcast %13 : f32 to vector<128xf32>
    %15 = arith.addf %12, %14 : vector<128xf32>
    %16 = vector.shape_cast %15 : vector<128xf32> to vector<1x128xf32>
    %c0_10 = arith.constant 0 : index
    %c0_11 = arith.constant 0 : index
    %17 = vector.load %arg6[%c0_10, %c0_11] : memref<1x128xf32, #tpu.memory_space<vmem>>, vector<1x128xf32>
    tpu.vector_store %arg6[%c0_10, %c0_11], %16 {strides = array<i32>} : memref<1x128xf32, #tpu.memory_space<vmem>>, vector<1x128xf32>,
    return
  }
  func.func @transform_0(%arg0: i32) -> (i32, i32) {
    %c0_i32 = arith.constant 0 : i32
    %c0_i32_0 = arith.constant 0 : i32
    return %arg0, %c0_i32 : i32, i32
  }
  func.func @transform_1(%arg0: i32) -> (i32, i32) {
    %c0_i32 = arith.constant 0 : i32
    %c0_i32_0 = arith.constant 0 : i32
    %c0_i32_1 = arith.constant 0 : i32
    return %c0_i32, %c0_i32_0 : i32, i32
  }
  func.func @transform_2(%arg0: i32) -> (i32, i32) {
    %c0_i32 = arith.constant 0 : i32
    %c0_i32_0 = arith.constant 0 : i32
    %c0_i32_1 = arith.constant 0 : i32
    return %c0_i32, %c0_i32_0 : i32, i32
  }
  func.func @transform_3(%arg0: i32) -> (i32, i32) {
    %c0_i32 = arith.constant 0 : i32
    %c0_i32_0 = arith.constant 0 : i32
    %c0_i32_1 = arith.constant 0 : i32
    return %c0_i32, %c0_i32_0 : i32, i32
  }
  func.func @transform_4(%arg0: i32) -> i32 {
    %c0_i32 = arith.constant 0 : i32
    %c0_i32_0 = arith.constant 0 : i32
    return %c0_i32 : i32
  }
  func.func @transform_5(%arg0: i32) -> (i32, i32) {
    %c0_i32 = arith.constant 0 : i32
    %c0_i32_0 = arith.constant 0 : i32
    return %c0_i32, %arg0 : i32, i32
  }
}

</mosaic_0001>

<llo_original>
// kernel: tpu_custom_call.1
$region0: #{tpu_custom_call.1}
  #allocation0 [shape = 'u32[]', space=smem, size = 0x4, offset = 0x4, fixed_abs, tag = 'smem constant byte address 0x4 - core index']
  #allocation1 [shape = 'u32[72,128]{1,0:T(1,128)}', space=vmem, size = 0x9000, scoped, tag = 'internal scratch']
  #allocation2 [shape = 'f32[1]{0:T(128)S(6)}', space=smem, size = 0x200, scoped, tag = 'scoped memory for tpu_custom_call.1']
  %s0 = inlined_call_operand.hbm [shape: f32[2,1024], index: 0, kind: input, shape index: {}]
  %s1 = inlined_call_operand.hbm [shape: bf16[1024,128], index: 1, kind: input, shape index: {}]
  %s2 = inlined_call_operand.vmem [shape: f32[1,128], index: 2, kind: input, shape index: {}]
  %s3 = inlined_call_operand.vmem [shape: f32[1,128], index: 3, kind: input, shape index: {}]
  %s4 = inlined_call_operand.<no memory space> [shape: f32[1], index: 4, kind: input, shape index: {}]
  %s5 = inlined_call_operand.hbm [shape: f32[1,128], index: 5, kind: output, shape index: {}]
  %s6 = sld [smem:[#allocation0]]
  $region38: #{tpu_custom_call.1} parent=0
    _
  %s8 = ssub.s32 1, %s6
  %s9 = scalar_select 0, %s8, %s6
  %10 = sst [smem:[#allocation2]] %s4
  $region1: #{tpu_custom_call.1} parent=0
    #allocation3 [shape = 'u8[524288]{0}', space=vmem, size = 0x80000, scoped, tag = 'input window, operand 0, single buffered']
    #allocation4 [shape = 's32[1]{0}', space=sflag, size = 0x4, scoped, tag = 'scoped memory for tpu_custom_call.1']
    #allocation5 [shape = 's32[1]{0}', space=sflag, size = 0x4, scoped, tag = 'scoped memory for tpu_custom_call.1']
    #allocation6 [shape = 'u8[262144]{0}', space=vmem, size = 0x40000, scoped, tag = 'input window, operand 1, single buffered']
    #allocation7 [shape = 's32[1]{0}', space=sflag, size = 0x4, scoped, tag = 'scoped memory for tpu_custom_call.1']
    #allocation8 [shape = 'u8[512]{0}', space=vmem, size = 0x400, scoped, tag = 'output window, operand 0, single buffered']
    %11 = vsyncpa [#allocation4], 0
    %12 = vsyncpa [#allocation7], 0
    %13 = vsyncpa [#allocation5], 0
    // Predicated region
    $region2: #{tpu_custom_call.1} parent=1 // pred_check
      _
    $region3: #{tpu_custom_call.1} parent=1 // pred_check_branch
      %15 = sbr.rel (0) target = $region5
    $region4: #{tpu_custom_call.1} parent=1 // pred_region
      %17 = vsyncadd [#allocation4], 16128
      %s18 = sshll.u32 %s0, 4
      %s19 = int_to_ptr.hbm [resolvable:$true] %s18
      %s20 = sshll.u32 [#allocation3], 4
      %s21 = int_to_ptr.vmem [resolvable:$true] %s20
      %26 = dma.hbm_to_vmem [thread:$0]  %s19, 256, %s21, [#allocation4], 256, 256, 16
    $region5: #{tpu_custom_call.1} parent=1 // pred_fallthru
      _
    // Predicated region
    $region6: #{tpu_custom_call.1} parent=1 // pred_check
      _
    $region7: #{tpu_custom_call.1} parent=1 // pred_check_branch
      %28 = sbr.rel (0) target = $region9
    $region8: #{tpu_custom_call.1} parent=1 // pred_region
      %30 = vsyncadd [#allocation7], 0
      %s31 = sshll.u32 %s1, 4
      %s32 = int_to_ptr.hbm [resolvable:$true] %s31
      %s33 = sshll.u32 [#allocation6], 4
      %s34 = int_to_ptr.vmem [resolvable:$true] %s33
      %39 = dma.hbm_to_vmem [thread:$0]  %s32, 8192, %s34, [#allocation7], 64, 64, 4
    $region9: #{tpu_custom_call.1} parent=1 // pred_fallthru
      _
    // Predicated region
    $region10: #{tpu_custom_call.1} parent=1 // pred_check
      _
    $region11: #{tpu_custom_call.1} parent=1 // pred_check_branch
      %41 = sbr.rel (0) target = $region13
    $region12: #{tpu_custom_call.1} parent=1 // pred_region
      _
    $region13: #{tpu_custom_call.1} parent=1 // pred_fallthru
      _
    // Predicated region
    $region14: #{tpu_custom_call.1} parent=1 // pred_check
      _
    $region15: #{tpu_custom_call.1} parent=1 // pred_check_branch
      %43 = sbr.rel (0) target = $region17
    $region16: #{tpu_custom_call.1} parent=1 // pred_region
      _
    $region17: #{tpu_custom_call.1} parent=1 // pred_fallthru
      _
    // Predicated region
    $region18: #{tpu_custom_call.1} parent=1 // pred_check
      _
    $region19: #{tpu_custom_call.1} parent=1 // pred_check_branch
      %45 = sbr.rel (0) target = $region21
    $region20: #{tpu_custom_call.1} parent=1 // pred_region
      _
    $region21: #{tpu_custom_call.1} parent=1 // pred_fallthru
      _
    // Predicated region
    $region22: #{tpu_custom_call.1} parent=1 // pred_check
      _
    $region23: #{tpu_custom_call.1} parent=1 // pred_check_branch
      %47 = sbr.rel (0) target = $region25
    $region24: #{tpu_custom_call.1} parent=1 // pred_region
      %49 = dma.done [#allocation4], 16384
    $region25: #{tpu_custom_call.1} parent=1 // pred_fallthru
      _
    // Predicated region
    $region26: #{tpu_custom_call.1} parent=1 // pred_check
      _
    $region27: #{tpu_custom_call.1} parent=1 // pred_check_branch
      %51 = sbr.rel (0) target = $region29
    $region28: #{tpu_custom_call.1} parent=1 // pred_region
      %53 = dma.done [#allocation7], 8192
    $region29: #{tpu_custom_call.1} parent=1 // pred_fallthru
      _
    %v54 = vld [vmem:[#allocation3] sm:$0xff]
    %v55 = vld [vmem:[#allocation3 + $0x8] sm:$0xff]
    %v56 = vld [vmem:[#allocation3 + $0x10] sm:$0xff]
    %v57 = vld [vmem:[#allocation3 + $0x18] sm:$0xff]
    %v58 = vld [vmem:[#allocation3 + $0x20] sm:$0xff]
    %v59 = vld [vmem:[#allocation3 + $0x28] sm:$0xff]
    %v60 = vld [vmem:[#allocation3 + $0x30] sm:$0xff]
    %v61 = vld [vmem:[#allocation3 + $0x38] sm:$0xff]
    %v62 = vld [vmem:[#allocation3 + $0x40] sm:$0xff]
    %v63 = vld [vmem:[#allocation3 + $0x48] sm:$0xff]
    %v64 = vld [vmem:[#allocation3 + $0x50] sm:$0xff]
    %v65 = vld [vmem:[#allocation3 + $0x58] sm:$0xff]
    %v66 = vld [vmem:[#allocation3 + $0x60] sm:$0xff]
    %v67 = vld [vmem:[#allocation3 + $0x68] sm:$0xff]
    %v68 = vld [vmem:[#allocation3 + $0x70] sm:$0xff]
    %v69 = vld [vmem:[#allocation3 + $0x78] sm:$0xff]
    %v70 = vld [vmem:[#allocation3 + $0x80] sm:$0xff]
    %v71 = vld [vmem:[#allocation3 + $0x88] sm:$0xff]
    %v72 = vld [vmem:[#allocation3 + $0x90] sm:$0xff]
    %v73 = vld [vmem:[#allocation3 + $0x98] sm:$0xff]
    %v74 = vld [vmem:[#allocation3 + $0xa0] sm:$0xff]
    %v75 = vld [vmem:[#allocation3 + $0xa8] sm:$0xff]
    %v76 = vld [vmem:[#allocation3 + $0xb0] sm:$0xff]
    %v77 = vld [vmem:[#allocation3 + $0xb8] sm:$0xff]
    %v78 = vld [vmem:[#allocation3 + $0xc0] sm:$0xff]
    %v79 = vld [vmem:[#allocation3 + $0xc8] sm:$0xff]
    %v80 = vld [vmem:[#allocation3 + $0xd0] sm:$0xff]
    %v81 = vld [vmem:[#allocation3 + $0xd8] sm:$0xff]
    %v82 = vld [vmem:[#allocation3 + $0xe0] sm:$0xff]
    %v83 = vld [vmem:[#allocation3 + $0xe8] sm:$0xff]
    %v84 = vld [vmem:[#allocation3 + $0xf0] sm:$0xff]
    %v85 = vld [vmem:[#allocation3 + $0xf8] sm:$0xff]
    %v86 = vld [vmem:[#allocation3 + $0x100] sm:$0xff]
    %v87 = vld [vmem:[#allocation3 + $0x108] sm:$0xff]
    %v88 = vld [vmem:[#allocation3 + $0x110] sm:$0xff]
    %v89 = vld [vmem:[#allocation3 + $0x118] sm:$0xff]
    %v90 = vld [vmem:[#allocation3 + $0x120] sm:$0xff]
    %v91 = vld [vmem:[#allocation3 + $0x128] sm:$0xff]
    %v92 = vld [vmem:[#allocation3 + $0x130] sm:$0xff]
    %v93 = vld [vmem:[#allocation3 + $0x138] sm:$0xff]
    %v94 = vld [vmem:[#allocation3 + $0x140] sm:$0xff]
    %v95 = vld [vmem:[#allocation3 + $0x148] sm:$0xff]
    %v96 = vld [vmem:[#allocation3 + $0x150] sm:$0xff]
    %v97 = vld [vmem:[#allocation3 + $0x158] sm:$0xff]
    %v98 = vld [vmem:[#allocation3 + $0x160] sm:$0xff]
    %v99 = vld [vmem:[#allocation3 + $0x168] sm:$0xff]
    %v100 = vld [vmem:[#allocation3 + $0x170] sm:$0xff]
    %v101 = vld [vmem:[#allocation3 + $0x178] sm:$0xff]
    %v102 = vld [vmem:[#allocation3 + $0x180] sm:$0xff]
    %v103 = vld [vmem:[#allocation3 + $0x188] sm:$0xff]
    %v104 = vld [vmem:[#allocation3 + $0x190] sm:$0xff]
    %v105 = vld [vmem:[#allocation3 + $0x198] sm:$0xff]
    %v106 = vld [vmem:[#allocation3 + $0x1a0] sm:$0xff]
    %v107 = vld [vmem:[#allocation3 + $0x1a8] sm:$0xff]
    %v108 = vld [vmem:[#allocation3 + $0x1b0] sm:$0xff]
    %v109 = vld [vmem:[#allocation3 + $0x1b8] sm:$0xff]
    %v110 = vld [vmem:[#allocation3 + $0x1c0] sm:$0xff]
    %v111 = vld [vmem:[#allocation3 + $0x1c8] sm:$0xff]
    %v112 = vld [vmem:[#allocation3 + $0x1d0] sm:$0xff]
    %v113 = vld [vmem:[#allocation3 + $0x1d8] sm:$0xff]
    %v114 = vld [vmem:[#allocation3 + $0x1e0] sm:$0xff]
    %v115 = vld [vmem:[#allocation3 + $0x1e8] sm:$0xff]
    %v116 = vld [vmem:[#allocation3 + $0x1f0] sm:$0xff]
    %v117 = vld [vmem:[#allocation3 + $0x1f8] sm:$0xff]
    %v118 = vld [vmem:[#allocation3 + $0x200] sm:$0xff]
    %v119 = vld [vmem:[#allocation3 + $0x208] sm:$0xff]
    %v120 = vld [vmem:[#allocation3 + $0x210] sm:$0xff]
    %v121 = vld [vmem:[#allocation3 + $0x218] sm:$0xff]
    %v122 = vld [vmem:[#allocation3 + $0x220] sm:$0xff]
    %v123 = vld [vmem:[#allocation3 + $0x228] sm:$0xff]
    %v124 = vld [vmem:[#allocation3 + $0x230] sm:$0xff]
    %v125 = vld [vmem:[#allocation3 + $0x238] sm:$0xff]
    %v126 = vld [vmem:[#allocation3 + $0x240] sm:$0xff]
    %v127 = vld [vmem:[#allocation3 + $0x248] sm:$0xff]
    %v128 = vld [vmem:[#allocation3 + $0x250] sm:$0xff]
    %v129 = vld [vmem:[#allocation3 + $0x258] sm:$0xff]
    %v130 = vld [vmem:[#allocation3 + $0x260] sm:$0xff]
    %v131 = vld [vmem:[#allocation3 + $0x268] sm:$0xff]
    %v132 = vld [vmem:[#allocation3 + $0x270] sm:$0xff]
    %v133 = vld [vmem:[#allocation3 + $0x278] sm:$0xff]
    %v134 = vld [vmem:[#allocation3 + $0x280] sm:$0xff]
    %v135 = vld [vmem:[#allocation3 + $0x288] sm:$0xff]
    %v136 = vld [vmem:[#allocation3 + $0x290] sm:$0xff]
    %v137 = vld [vmem:[#allocation3 + $0x298] sm:$0xff]
    %v138 = vld [vmem:[#allocation3 + $0x2a0] sm:$0xff]
    %v139 = vld [vmem:[#allocation3 + $0x2a8] sm:$0xff]
    %v140 = vld [vmem:[#allocation3 + $0x2b0] sm:$0xff]
    %v141 = vld [vmem:[#allocation3 + $0x2b8] sm:$0xff]
    %v142 = vld [vmem:[#allocation3 + $0x2c0] sm:$0xff]
    %v143 = vld [vmem:[#allocation3 + $0x2c8] sm:$0xff]
    %v144 = vld [vmem:[#allocation3 + $0x2d0] sm:$0xff]
    %v145 = vld [vmem:[#allocation3 + $0x2d8] sm:$0xff]
    %v146 = vld [vmem:[#allocation3 + $0x2e0] sm:$0xff]
    %v147 = vld [vmem:[#allocation3 + $0x2e8] sm:$0xff]
    %v148 = vld [vmem:[#allocation3 + $0x2f0] sm:$0xff]
    %v149 = vld [vmem:[#allocation3 + $0x2f8] sm:$0xff]
    %v150 = vld [vmem:[#allocation3 + $0x300] sm:$0xff]
    %v151 = vld [vmem:[#allocation3 + $0x308] sm:$0xff]
    %v152 = vld [vmem:[#allocation3 + $0x310] sm:$0xff]
    %v153 = vld [vmem:[#allocation3 + $0x318] sm:$0xff]
    %v154 = vld [vmem:[#allocation3 + $0x320] sm:$0xff]
    %v155 = vld [vmem:[#allocation3 + $0x328] sm:$0xff]
    %v156 = vld [vmem:[#allocation3 + $0x330] sm:$0xff]
    %v157 = vld [vmem:[#allocation3 + $0x338] sm:$0xff]
    %v158 = vld [vmem:[#allocation3 + $0x340] sm:$0xff]
    %v159 = vld [vmem:[#allocation3 + $0x348] sm:$0xff]
    %v160 = vld [vmem:[#allocation3 + $0x350] sm:$0xff]
    %v161 = vld [vmem:[#allocation3 + $0x358] sm:$0xff]
    %v162 = vld [vmem:[#allocation3 + $0x360] sm:$0xff]
    %v163 = vld [vmem:[#allocation3 + $0x368] sm:$0xff]
    %v164 = vld [vmem:[#allocation3 + $0x370] sm:$0xff]
    %v165 = vld [vmem:[#allocation3 + $0x378] sm:$0xff]
    %v166 = vld [vmem:[#allocation3 + $0x380] sm:$0xff]
    %v167 = vld [vmem:[#allocation3 + $0x388] sm:$0xff]
    %v168 = vld [vmem:[#allocation3 + $0x390] sm:$0xff]
    %v169 = vld [vmem:[#allocation3 + $0x398] sm:$0xff]
    %v170 = vld [vmem:[#allocation3 + $0x3a0] sm:$0xff]
    %v171 = vld [vmem:[#allocation3 + $0x3a8] sm:$0xff]
    %v172 = vld [vmem:[#allocation3 + $0x3b0] sm:$0xff]
    %v173 = vld [vmem:[#allocation3 + $0x3b8] sm:$0xff]
    %v174 = vld [vmem:[#allocation3 + $0x3c0] sm:$0xff]
    %v175 = vld [vmem:[#allocation3 + $0x3c8] sm:$0xff]
    %v176 = vld [vmem:[#allocation3 + $0x3d0] sm:$0xff]
    %v177 = vld [vmem:[#allocation3 + $0x3d8] sm:$0xff]
    %v178 = vld [vmem:[#allocation3 + $0x3e0] sm:$0xff]
    %v179 = vld [vmem:[#allocation3 + $0x3e8] sm:$0xff]
    %v180 = vld [vmem:[#allocation3 + $0x3f0] sm:$0xff]
    %v181 = vld [vmem:[#allocation3 + $0x3f8] sm:$0xff]
    %310 = vst [vmem:[#allocation1] ss:$4 sm:$0xff] %v54
    %s311 = scalar_lea.vmem [#allocation1], 1
    %312 = vst [vmem:[%s311] ss:$4 sm:$0xff] %v56
    %s313 = scalar_lea.vmem [#allocation1], 2
    %314 = vst [vmem:[%s313] ss:$4 sm:$0xff] %v58
    %s315 = scalar_lea.vmem [#allocation1], 3
    %316 = vst [vmem:[%s315] ss:$4 sm:$0xff] %v60
    %s317 = scalar_lea.vmem [#allocation1], 32
    %318 = vst [vmem:[%s317] ss:$4 sm:$0xff] %v55
    %s319 = scalar_lea.vmem [#allocation1], 33
    %320 = vst [vmem:[%s319] ss:$4 sm:$0xff] %v57
    %s321 = scalar_lea.vmem [#allocation1], 34
    %322 = vst [vmem:[%s321] ss:$4 sm:$0xff] %v59
    %s323 = scalar_lea.vmem [#allocation1], 35
    %324 = vst [vmem:[%s323] ss:$4 sm:$0xff] %v61
    %v325 = vld.sshfl [vmem:[#allocation1] sm:$0xff pattern:$0x73625140]
    %v326 = vld.sshfl [vmem:[#allocation1 + $0x8] sm:$0xff pattern:$0x73625140]
    %v327 = vld.sshfl [vmem:[#allocation1 + $0x10] sm:$0xff pattern:$0x73625140]
    %v328 = vld.sshfl [vmem:[#allocation1 + $0x18] sm:$0xff pattern:$0x73625140]
    %v329 = vld.sshfl [vmem:[#allocation1 + $0x20] sm:$0xff pattern:$0x73625140]
    %v330 = vld.sshfl [vmem:[#allocation1 + $0x28] sm:$0xff pattern:$0x73625140]
    %v331 = vld.sshfl [vmem:[#allocation1 + $0x30] sm:$0xff pattern:$0x73625140]
    %v332 = vld.sshfl [vmem:[#allocation1 + $0x38] sm:$0xff pattern:$0x73625140]
    %333 = vst [vmem:[#allocation1] ss:$4 sm:$0xff] %v62
    %334 = vst [vmem:[%s311] ss:$4 sm:$0xff] %v64
    %335 = vst [vmem:[%s313] ss:$4 sm:$0xff] %v66
    %336 = vst [vmem:[%s315] ss:$4 sm:$0xff] %v68
    %337 = vst [vmem:[%s317] ss:$4 sm:$0xff] %v63
    %338 = vst [vmem:[%s319] ss:$4 sm:$0xff] %v65
    %339 = vst [vmem:[%s321] ss:$4 sm:$0xff] %v67
    %340 = vst [vmem:[%s323] ss:$4 sm:$0xff] %v69
    %v341 = vld.sshfl [vmem:[#allocation1] sm:$0xff pattern:$0x73625140]
    %v342 = vld.sshfl [vmem:[#allocation1 + $0x8] sm:$0xff pattern:$0x73625140]
    %v343 = vld.sshfl [vmem:[#allocation1 + $0x10] sm:$0xff pattern:$0x73625140]
    %v344 = vld.sshfl [vmem:[#allocation1 + $0x18] sm:$0xff pattern:$0x73625140]
    %v345 = vld.sshfl [vmem:[#allocation1 + $0x20] sm:$0xff pattern:$0x73625140]
    %v346 = vld.sshfl [vmem:[#allocation1 + $0x28] sm:$0xff pattern:$0x73625140]
    %v347 = vld.sshfl [vmem:[#allocation1 + $0x30] sm:$0xff pattern:$0x73625140]
    %v348 = vld.sshfl [vmem:[#allocation1 + $0x38] sm:$0xff pattern:$0x73625140]
    %349 = vst [vmem:[#allocation1] ss:$4 sm:$0xff] %v70
    %350 = vst [vmem:[%s311] ss:$4 sm:$0xff] %v72
    %351 = vst [vmem:[%s313] ss:$4 sm:$0xff] %v74
    %352 = vst [vmem:[%s315] ss:$4 sm:$0xff] %v76
    %353 = vst [vmem:[%s317] ss:$4 sm:$0xff] %v71
    %354 = vst [vmem:[%s319] ss:$4 sm:$0xff] %v73
    %355 = vst [vmem:[%s321] ss:$4 sm:$0xff] %v75
    %356 = vst [vmem:[%s323] ss:$4 sm:$0xff] %v77
    %v357 = vld.sshfl [vmem:[#allocation1] sm:$0xff pattern:$0x73625140]
    %v358 = vld.sshfl [vmem:[#allocation1 + $0x8] sm:$0xff pattern:$0x73625140]
    %v359 = vld.sshfl [vmem:[#allocation1 + $0x10] sm:$0xff pattern:$0x73625140]
    %v360 = vld.sshfl [vmem:[#allocation1 + $0x18] sm:$0xff pattern:$0x73625140]
    %v361 = vld.sshfl [vmem:[#allocation1 + $0x20] sm:$0xff pattern:$0x73625140]
    %v362 = vld.sshfl [vmem:[#allocation1 + $0x28] sm:$0xff pattern:$0x73625140]
    %v363 = vld.sshfl [vmem:[#allocation1 + $0x30] sm:$0xff pattern:$0x73625140]
    %v364 = vld.sshfl [vmem:[#allocation1 + $0x38] sm:$0xff pattern:$0x73625140]
    %365 = vst [vmem:[#allocation1] ss:$4 sm:$0xff] %v78
    %366 = vst [vmem:[%s311] ss:$4 sm:$0xff] %v80
    %367 = vst [vmem:[%s313] ss:$4 sm:$0xff] %v82
    %368 = vst [vmem:[%s315] ss:$4 sm:$0xff] %v84
    %369 = vst [vmem:[%s317] ss:$4 sm:$0xff] %v79
    %370 = vst [vmem:[%s319] ss:$4 sm:$0xff] %v81
    %371 = vst [vmem:[%s321] ss:$4 sm:$0xff] %v83
    %372 = vst [vmem:[%s323] ss:$4 sm:$0xff] %v85
    %v373 = vld.sshfl [vmem:[#allocation1] sm:$0xff pattern:$0x73625140]
    %v374 = vld.sshfl [vmem:[#allocation1 + $0x8] sm:$0xff pattern:$0x73625140]
    %v375 = vld.sshfl [vmem:[#allocation1 + $0x10] sm:$0xff pattern:$0x73625140]
    %v376 = vld.sshfl [vmem:[#allocation1 + $0x18] sm:$0xff pattern:$0x73625140]
    %v377 = vld.sshfl [vmem:[#allocation1 + $0x20] sm:$0xff pattern:$0x73625140]
    %v378 = vld.sshfl [vmem:[#allocation1 + $0x28] sm:$0xff pattern:$0x73625140]
    %v379 = vld.sshfl [vmem:[#allocation1 + $0x30] sm:$0xff pattern:$0x73625140]
    %v380 = vld.sshfl [vmem:[#allocation1 + $0x38] sm:$0xff pattern:$0x73625140]
    %381 = vst [vmem:[#allocation1] ss:$4 sm:$0xff] %v86
    %382 = vst [vmem:[%s311] ss:$4 sm:$0xff] %v88
    %383 = vst [vmem:[%s313] ss:$4 sm:$0xff] %v90
    %384 = vst [vmem:[%s315] ss:$4 sm:$0xff] %v92
    %385 = vst [vmem:[%s317] ss:$4 sm:$0xff] %v87
    %386 = vst [vmem:[%s319] ss:$4 sm:$0xff] %v89
    %387 = vst [vmem:[%s321] ss:$4 sm:$0xff] %v91
    %388 = vst [vmem:[%s323] ss:$4 sm:$0xff] %v93
    %v389 = vld.sshfl [vmem:[#allocation1] sm:$0xff pattern:$0x73625140]
    %v390 = vld.sshfl [vmem:[#allocation1 + $0x8] sm:$0xff pattern:$0x73625140]
    %v391 = vld.sshfl [vmem:[#allocation1 + $0x10] sm:$0xff pattern:$0x73625140]
    %v392 = vld.sshfl [vmem:[#allocation1 + $0x18] sm:$0xff pattern:$0x73625140]
    %v393 = vld.sshfl [vmem:[#allocation1 + $0x20] sm:$0xff pattern:$0x73625140]
    %v394 = vld.sshfl [vmem:[#allocation1 + $0x28] sm:$0xff pattern:$0x73625140]
    %v395 = vld.sshfl [vmem:[#allocation1 + $0x30] sm:$0xff pattern:$0x73625140]
    %v396 = vld.sshfl [vmem:[#allocation1 + $0x38] sm:$0xff pattern:$0x73625140]
    %397 = vst [vmem:[#allocation1] ss:$4 sm:$0xff] %v94
    %398 = vst [vmem:[%s311] ss:$4 sm:$0xff] %v96
    %399 = vst [vmem:[%s313] ss:$4 sm:$0xff] %v98
    %400 = vst [vmem:[%s315] ss:$4 sm:$0xff] %v100
    %401 = vst [vmem:[%s317] ss:$4 sm:$0xff] %v95
    %402 = vst [vmem:[%s319] ss:$4 sm:$0xff] %v97
    %403 = vst [vmem:[%s321] ss:$4 sm:$0xff] %v99
    %404 = vst [vmem:[%s323] ss:$4 sm:$0xff] %v101
    %v405 = vld.sshfl [vmem:[#allocation1] sm:$0xff pattern:$0x73625140]
    %v406 = vld.sshfl [vmem:[#allocation1 + $0x8] sm:$0xff pattern:$0x73625140]
    %v407 = vld.sshfl [vmem:[#allocation1 + $0x10] sm:$0xff pattern:$0x73625140]
    %v408 = vld.sshfl [vmem:[#allocation1 + $0x18] sm:$0xff pattern:$0x73625140]
    %v409 = vld.sshfl [vmem:[#allocation1 + $0x20] sm:$0xff pattern:$0x73625140]
    %v410 = vld.sshfl [vmem:[#allocation1 + $0x28] sm:$0xff pattern:$0x73625140]
    %v411 = vld.sshfl [vmem:[#allocation1 + $0x30] sm:$0xff pattern:$0x73625140]
    %v412 = vld.sshfl [vmem:[#allocation1 + $0x38] sm:$0xff pattern:$0x73625140]
    %413 = vst [vmem:[#allocation1] ss:$4 sm:$0xff] %v102
    %414 = vst [vmem:[%s311] ss:$4 sm:$0xff] %v104
    %415 = vst [vmem:[%s313] ss:$4 sm:$0xff] %v106
    %416 = vst [vmem:[%s315] ss:$4 sm:$0xff] %v108
    %417 = vst [vmem:[%s317] ss:$4 sm:$0xff] %v103
    %418 = vst [vmem:[%s319] ss:$4 sm:$0xff] %v105
    %419 = vst [vmem:[%s321] ss:$4 sm:$0xff] %v107
    %420 = vst [vmem:[%s323] ss:$4 sm:$0xff] %v109
    %v421 = vld.sshfl [vmem:[#allocation1] sm:$0xff pattern:$0x73625140]
    %v422 = vld.sshfl [vmem:[#allocation1 + $0x8] sm:$0xff pattern:$0x73625140]
    %v423 = vld.sshfl [vmem:[#allocation1 + $0x10] sm:$0xff pattern:$0x73625140]
    %v424 = vld.sshfl [vmem:[#allocation1 + $0x18] sm:$0xff pattern:$0x73625140]
    %v425 = vld.sshfl [vmem:[#allocation1 + $0x20] sm:$0xff pattern:$0x73625140]
    %v426 = vld.sshfl [vmem:[#allocation1 + $0x28] sm:$0xff pattern:$0x73625140]
    %v427 = vld.sshfl [vmem:[#allocation1 + $0x30] sm:$0xff pattern:$0x73625140]
    %v428 = vld.sshfl [vmem:[#allocation1 + $0x38] sm:$0xff pattern:$0x73625140]
    %429 = vst [vmem:[#allocation1] ss:$4 sm:$0xff] %v110
    %430 = vst [vmem:[%s311] ss:$4 sm:$0xff] %v112
    %431 = vst [vmem:[%s313] ss:$4 sm:$0xff] %v114
    %432 = vst [vmem:[%s315] ss:$4 sm:$0xff] %v116
    %433 = vst [vmem:[%s317] ss:$4 sm:$0xff] %v111
    %434 = vst [vmem:[%s319] ss:$4 sm:$0xff] %v113
    %435 = vst [vmem:[%s321] ss:$4 sm:$0xff] %v115
    %436 = vst [vmem:[%s323] ss:$4 sm:$0xff] %v117
    %v437 = vld.sshfl [vmem:[#allocation1] sm:$0xff pattern:$0x73625140]
    %v438 = vld.sshfl [vmem:[#allocation1 + $0x8] sm:$0xff pattern:$0x73625140]
    %v439 = vld.sshfl [vmem:[#allocation1 + $0x10] sm:$0xff pattern:$0x73625140]
    %v440 = vld.sshfl [vmem:[#allocation1 + $0x18] sm:$0xff pattern:$0x73625140]
    %v441 = vld.sshfl [vmem:[#allocation1 + $0x20] sm:$0xff pattern:$0x73625140]
    %v442 = vld.sshfl [vmem:[#allocation1 + $0x28] sm:$0xff pattern:$0x73625140]
    %v443 = vld.sshfl [vmem:[#allocation1 + $0x30] sm:$0xff pattern:$0x73625140]
    %v444 = vld.sshfl [vmem:[#allocation1 + $0x38] sm:$0xff pattern:$0x73625140]
    %445 = vst [vmem:[#allocation1] ss:$4 sm:$0xff] %v118
    %446 = vst [vmem:[%s311] ss:$4 sm:$0xff] %v120
    %447 = vst [vmem:[%s313] ss:$4 sm:$0xff] %v122
    %448 = vst [vmem:[%s315] ss:$4 sm:$0xff] %v124
    %449 = vst [vmem:[%s317] ss:$4 sm:$0xff] %v119
    %450 = vst [vmem:[%s319] ss:$4 sm:$0xff] %v121
    %451 = vst [vmem:[%s321] ss:$4 sm:$0xff] %v123
    %452 = vst [vmem:[%s323] ss:$4 sm:$0xff] %v125
    %v453 = vld.sshfl [vmem:[#allocation1] sm:$0xff pattern:$0x73625140]
    %v454 = vld.sshfl [vmem:[#allocation1 + $0x8] sm:$0xff pattern:$0x73625140]
    %v455 = vld.sshfl [vmem:[#allocation1 + $0x10] sm:$0xff pattern:$0x73625140]
    %v456 = vld.sshfl [vmem:[#allocation1 + $0x18] sm:$0xff pattern:$0x73625140]
    %v457 = vld.sshfl [vmem:[#allocation1 + $0x20] sm:$0xff pattern:$0x73625140]
    %v458 = vld.sshfl [vmem:[#allocation1 + $0x28] sm:$0xff pattern:$0x73625140]
    %v459 = vld.sshfl [vmem:[#allocation1 + $0x30] sm:$0xff pattern:$0x73625140]
    %v460 = vld.sshfl [vmem:[#allocation1 + $0x38] sm:$0xff pattern:$0x73625140]
    %461 = vst [vmem:[#allocation1] ss:$4 sm:$0xff] %v126
    %462 = vst [vmem:[%s311] ss:$4 sm:$0xff] %v128
    %463 = vst [vmem:[%s313] ss:$4 sm:$0xff] %v130
    %464 = vst [vmem:[%s315] ss:$4 sm:$0xff] %v132
    %465 = vst [vmem:[%s317] ss:$4 sm:$0xff] %v127
    %466 = vst [vmem:[%s319] ss:$4 sm:$0xff] %v129
    %467 = vst [vmem:[%s321] ss:$4 sm:$0xff] %v131
    %468 = vst [vmem:[%s323] ss:$4 sm:$0xff] %v133
    %v469 = vld.sshfl [vmem:[#allocation1] sm:$0xff pattern:$0x73625140]
    %v470 = vld.sshfl [vmem:[#allocation1 + $0x8] sm:$0xff pattern:$0x73625140]
    %v471 = vld.sshfl [vmem:[#allocation1 + $0x10] sm:$0xff pattern:$0x73625140]
    %v472 = vld.sshfl [vmem:[#allocation1 + $0x18] sm:$0xff pattern:$0x73625140]
    %v473 = vld.sshfl [vmem:[#allocation1 + $0x20] sm:$0xff pattern:$0x73625140]
    %v474 = vld.sshfl [vmem:[#allocation1 + $0x28] sm:$0xff pattern:$0x73625140]
    %v475 = vld.sshfl [vmem:[#allocation1 + $0x30] sm:$0xff pattern:$0x73625140]
    %v476 = vld.sshfl [vmem:[#allocation1 + $0x38] sm:$0xff pattern:$0x73625140]
    %477 = vst [vmem:[#allocation1] ss:$4 sm:$0xff] %v134
    %478 = vst [vmem:[%s311] ss:$4 sm:$0xff] %v136
    %479 = vst [vmem:[%s313] ss:$4 sm:$0xff] %v138
    %480 = vst [vmem:[%s315] ss:$4 sm:$0xff] %v140
    %481 = vst [vmem:[%s317] ss:$4 sm:$0xff] %v135
    %482 = vst [vmem:[%s319] ss:$4 sm:$0xff] %v137
    %483 = vst [vmem:[%s321] ss:$4 sm:$0xff] %v139
    %484 = vst [vmem:[%s323] ss:$4 sm:$0xff] %v141
    %v485 = vld.sshfl [vmem:[#allocation1] sm:$0xff pattern:$0x73625140]
    %v486 = vld.sshfl [vmem:[#allocation1 + $0x8] sm:$0xff pattern:$0x73625140]
    %v487 = vld.sshfl [vmem:[#allocation1 + $0x10] sm:$0xff pattern:$0x73625140]
    %v488 = vld.sshfl [vmem:[#allocation1 + $0x18] sm:$0xff pattern:$0x73625140]
    %v489 = vld.sshfl [vmem:[#allocation1 + $0x20] sm:$0xff pattern:$0x73625140]
    %v490 = vld.sshfl [vmem:[#allocation1 + $0x28] sm:$0xff pattern:$0x73625140]
    %v491 = vld.sshfl [vmem:[#allocation1 + $0x30] sm:$0xff pattern:$0x73625140]
    %v492 = vld.sshfl [vmem:[#allocation1 + $0x38] sm:$0xff pattern:$0x73625140]
    %493 = vst [vmem:[#allocation1] ss:$4 sm:$0xff] %v142
    %494 = vst [vmem:[%s311] ss:$4 sm:$0xff] %v144
    %495 = vst [vmem:[%s313] ss:$4 sm:$0xff] %v146
    %496 = vst [vmem:[%s315] ss:$4 sm:$0xff] %v148
    %497 = vst [vmem:[%s317] ss:$4 sm:$0xff] %v143
    %498 = vst [vmem:[%s319] ss:$4 sm:$0xff] %v145
    %499 = vst [vmem:[%s321] ss:$4 sm:$0xff] %v147
    %500 = vst [vmem:[%s323] ss:$4 sm:$0xff] %v149
    %v501 = vld.sshfl [vmem:[#allocation1] sm:$0xff pattern:$0x73625140]
    %v502 = vld.sshfl [vmem:[#allocation1 + $0x8] sm:$0xff pattern:$0x73625140]
    %v503 = vld.sshfl [vmem:[#allocation1 + $0x10] sm:$0xff pattern:$0x73625140]
    %v504 = vld.sshfl [vmem:[#allocation1 + $0x18] sm:$0xff pattern:$0x73625140]
    %v505 = vld.sshfl [vmem:[#allocation1 + $0x20] sm:$0xff pattern:$0x73625140]
    %v506 = vld.sshfl [vmem:[#allocation1 + $0x28] sm:$0xff pattern:$0x73625140]
    %v507 = vld.sshfl [vmem:[#allocation1 + $0x30] sm:$0xff pattern:$0x73625140]
    %v508 = vld.sshfl [vmem:[#allocation1 + $0x38] sm:$0xff pattern:$0x73625140]
    %509 = vst [vmem:[#allocation1] ss:$4 sm:$0xff] %v150
    %510 = vst [vmem:[%s311] ss:$4 sm:$0xff] %v152
    %511 = vst [vmem:[%s313] ss:$4 sm:$0xff] %v154
    %512 = vst [vmem:[%s315] ss:$4 sm:$0xff] %v156
    %513 = vst [vmem:[%s317] ss:$4 sm:$0xff] %v151
    %514 = vst [vmem:[%s319] ss:$4 sm:$0xff] %v153
    %515 = vst [vmem:[%s321] ss:$4 sm:$0xff] %v155
    %516 = vst [vmem:[%s323] ss:$4 sm:$0xff] %v157
    %v517 = vld.sshfl [vmem:[#allocation1] sm:$0xff pattern:$0x73625140]
    %v518 = vld.sshfl [vmem:[#allocation1 + $0x8] sm:$0xff pattern:$0x73625140]
    %v519 = vld.sshfl [vmem:[#allocation1 + $0x10] sm:$0xff pattern:$0x73625140]
    %v520 = vld.sshfl [vmem:[#allocation1 + $0x18] sm:$0xff pattern:$0x73625140]
    %v521 = vld.sshfl [vmem:[#allocation1 + $0x20] sm:$0xff pattern:$0x73625140]
    %v522 = vld.sshfl [vmem:[#allocation1 + $0x28] sm:$0xff pattern:$0x73625140]
    %v523 = vld.sshfl [vmem:[#allocation1 + $0x30] sm:$0xff pattern:$0x73625140]
    %v524 = vld.sshfl [vmem:[#allocation1 + $0x38] sm:$0xff pattern:$0x73625140]
    %525 = vst [vmem:[#allocation1] ss:$4 sm:$0xff] %v158
    %526 = vst [vmem:[%s311] ss:$4 sm:$0xff] %v160
    %527 = vst [vmem:[%s313] ss:$4 sm:$0xff] %v162
    %528 = vst [vmem:[%s315] ss:$4 sm:$0xff] %v164
    %529 = vst [vmem:[%s317] ss:$4 sm:$0xff] %v159
    %530 = vst [vmem:[%s319] ss:$4 sm:$0xff] %v161
    %531 = vst [vmem:[%s321] ss:$4 sm:$0xff] %v163
    %532 = vst [vmem:[%s323] ss:$4 sm:$0xff] %v165
    %v533 = vld.sshfl [vmem:[#allocation1] sm:$0xff pattern:$0x73625140]
    %v534 = vld.sshfl [vmem:[#allocation1 + $0x8] sm:$0xff pattern:$0x73625140]
    %v535 = vld.sshfl [vmem:[#allocation1 + $0x10] sm:$0xff pattern:$0x73625140]
    %v536 = vld.sshfl [vmem:[#allocation1 + $0x18] sm:$0xff pattern:$0x73625140]
    %v537 = vld.sshfl [vmem:[#allocation1 + $0x20] sm:$0xff pattern:$0x73625140]
    %v538 = vld.sshfl [vmem:[#allocation1 + $0x28] sm:$0xff pattern:$0x73625140]
    %v539 = vld.sshfl [vmem:[#allocation1 + $0x30] sm:$0xff pattern:$0x73625140]
    %v540 = vld.sshfl [vmem:[#allocation1 + $0x38] sm:$0xff pattern:$0x73625140]
    %541 = vst [vmem:[#allocation1] ss:$4 sm:$0xff] %v166
    %542 = vst [vmem:[%s311] ss:$4 sm:$0xff] %v168
    %543 = vst [vmem:[%s313] ss:$4 sm:$0xff] %v170
    %544 = vst [vmem:[%s315] ss:$4 sm:$0xff] %v172
    %545 = vst [vmem:[%s317] ss:$4 sm:$0xff] %v167
    %546 = vst [vmem:[%s319] ss:$4 sm:$0xff] %v169
    %547 = vst [vmem:[%s321] ss:$4 sm:$0xff] %v171
    %548 = vst [vmem:[%s323] ss:$4 sm:$0xff] %v173
    %v549 = vld.sshfl [vmem:[#allocation1] sm:$0xff pattern:$0x73625140]
    %v550 = vld.sshfl [vmem:[#allocation1 + $0x8] sm:$0xff pattern:$0x73625140]
    %v551 = vld.sshfl [vmem:[#allocation1 + $0x10] sm:$0xff pattern:$0x73625140]
    %v552 = vld.sshfl [vmem:[#allocation1 + $0x18] sm:$0xff pattern:$0x73625140]
    %v553 = vld.sshfl [vmem:[#allocation1 + $0x20] sm:$0xff pattern:$0x73625140]
    %v554 = vld.sshfl [vmem:[#allocation1 + $0x28] sm:$0xff pattern:$0x73625140]
    %v555 = vld.sshfl [vmem:[#allocation1 + $0x30] sm:$0xff pattern:$0x73625140]
    %v556 = vld.sshfl [vmem:[#allocation1 + $0x38] sm:$0xff pattern:$0x73625140]
    %557 = vst [vmem:[#allocation1] ss:$4 sm:$0xff] %v174
    %558 = vst [vmem:[%s311] ss:$4 sm:$0xff] %v176
    %559 = vst [vmem:[%s313] ss:$4 sm:$0xff] %v178
    %560 = vst [vmem:[%s315] ss:$4 sm:$0xff] %v180
    %561 = vst [vmem:[%s317] ss:$4 sm:$0xff] %v175
    %562 = vst [vmem:[%s319] ss:$4 sm:$0xff] %v177
    %563 = vst [vmem:[%s321] ss:$4 sm:$0xff] %v179
    %564 = vst [vmem:[%s323] ss:$4 sm:$0xff] %v181
    %v565 = vld.sshfl [vmem:[#allocation1] sm:$0xff pattern:$0x73625140]
    %v566 = vld.sshfl [vmem:[#allocation1 + $0x8] sm:$0xff pattern:$0x73625140]
    %v567 = vld.sshfl [vmem:[#allocation1 + $0x10] sm:$0xff pattern:$0x73625140]
    %v568 = vld.sshfl [vmem:[#allocation1 + $0x18] sm:$0xff pattern:$0x73625140]
    %v569 = vld.sshfl [vmem:[#allocation1 + $0x20] sm:$0xff pattern:$0x73625140]
    %v570 = vld.sshfl [vmem:[#allocation1 + $0x28] sm:$0xff pattern:$0x73625140]
    %v571 = vld.sshfl [vmem:[#allocation1 + $0x30] sm:$0xff pattern:$0x73625140]
    %v572 = vld.sshfl [vmem:[#allocation1 + $0x38] sm:$0xff pattern:$0x73625140]
    %v701 = vpack.c.bf16 %v341, %v325
    %v702 = vpack.c.bf16 %v342, %v326
    %v703 = vpack.c.bf16 %v343, %v327
    %v704 = vpack.c.bf16 %v344, %v328
    %v705 = vpack.c.bf16 %v345, %v329
    %v706 = vpack.c.bf16 %v346, %v330
    %v707 = vpack.c.bf16 %v347, %v331
    %v708 = vpack.c.bf16 %v348, %v332
    %v709 = vpack.c.bf16 %v373, %v357
    %v710 = vpack.c.bf16 %v374, %v358
    %v711 = vpack.c.bf16 %v375, %v359
    %v712 = vpack.c.bf16 %v376, %v360
    %v713 = vpack.c.bf16 %v377, %v361
    %v714 = vpack.c.bf16 %v378, %v362
    %v715 = vpack.c.bf16 %v379, %v363
    %v716 = vpack.c.bf16 %v380, %v364
    %v717 = vpack.c.bf16 %v405, %v389
    %v718 = vpack.c.bf16 %v406, %v390
    %v719 = vpack.c.bf16 %v407, %v391
    %v720 = vpack.c.bf16 %v408, %v392
    %v721 = vpack.c.bf16 %v409, %v393
    %v722 = vpack.c.bf16 %v410, %v394
    %v723 = vpack.c.bf16 %v411, %v395
    %v724 = vpack.c.bf16 %v412, %v396
    %v725 = vpack.c.bf16 %v437, %v421
    %v726 = vpack.c.bf16 %v438, %v422
    %v727 = vpack.c.bf16 %v439, %v423
    %v728 = vpack.c.bf16 %v440, %v424
    %v729 = vpack.c.bf16 %v441, %v425
    %v730 = vpack.c.bf16 %v442, %v426
    %v731 = vpack.c.bf16 %v443, %v427
    %v732 = vpack.c.bf16 %v444, %v428
    %v733 = vpack.c.bf16 %v469, %v453
    %v734 = vpack.c.bf16 %v470, %v454
    %v735 = vpack.c.bf16 %v471, %v455
    %v736 = vpack.c.bf16 %v472, %v456
    %v737 = vpack.c.bf16 %v473, %v457
    %v738 = vpack.c.bf16 %v474, %v458
    %v739 = vpack.c.bf16 %v475, %v459
    %v740 = vpack.c.bf16 %v476, %v460
    %v741 = vpack.c.bf16 %v501, %v485
    %v742 = vpack.c.bf16 %v502, %v486
    %v743 = vpack.c.bf16 %v503, %v487
    %v744 = vpack.c.bf16 %v504, %v488
    %v745 = vpack.c.bf16 %v505, %v489
    %v746 = vpack.c.bf16 %v506, %v490
    %v747 = vpack.c.bf16 %v507, %v491
    %v748 = vpack.c.bf16 %v508, %v492
    %v749 = vpack.c.bf16 %v533, %v517
    %v750 = vpack.c.bf16 %v534, %v518
    %v751 = vpack.c.bf16 %v535, %v519
    %v752 = vpack.c.bf16 %v536, %v520
    %v753 = vpack.c.bf16 %v537, %v521
    %v754 = vpack.c.bf16 %v538, %v522
    %v755 = vpack.c.bf16 %v539, %v523
    %v756 = vpack.c.bf16 %v540, %v524
    %v757 = vpack.c.bf16 %v565, %v549
    %v758 = vpack.c.bf16 %v566, %v550
    %v759 = vpack.c.bf16 %v567, %v551
    %v760 = vpack.c.bf16 %v568, %v552
    %v761 = vpack.c.bf16 %v569, %v553
    %v762 = vpack.c.bf16 %v570, %v554
    %v763 = vpack.c.bf16 %v571, %v555
    %v764 = vpack.c.bf16 %v572, %v556
    %v765 = vld [vmem:[#allocation6] sm:$0xf]
    %v766 = vld [vmem:[#allocation6 + $0x4] sm:$0xf]
    %v767 = vld [vmem:[#allocation6 + $0x8] sm:$0xf]
    %v768 = vld [vmem:[#allocation6 + $0xc] sm:$0xf]
    %v769 = vld [vmem:[#allocation6 + $0x10] sm:$0xf]
    %v770 = vld [vmem:[#allocation6 + $0x14] sm:$0xf]
    %v771 = vld [vmem:[#allocation6 + $0x18] sm:$0xf]
    %v772 = vld [vmem:[#allocation6 + $0x1c] sm:$0xf]
    %v773 = vld [vmem:[#allocation6 + $0x20] sm:$0xf]
    %v774 = vld [vmem:[#allocation6 + $0x24] sm:$0xf]
    %v775 = vld [vmem:[#allocation6 + $0x28] sm:$0xf]
    %v776 = vld [vmem:[#allocation6 + $0x2c] sm:$0xf]
    %v777 = vld [vmem:[#allocation6 + $0x30] sm:$0xf]
    %v778 = vld [vmem:[#allocation6 + $0x34] sm:$0xf]
    %v779 = vld [vmem:[#allocation6 + $0x38] sm:$0xf]
    %v780 = vld [vmem:[#allocation6 + $0x3c] sm:$0xf]
    %v781 = vld [vmem:[#allocation6 + $0x40] sm:$0xf]
    %v782 = vld [vmem:[#allocation6 + $0x44] sm:$0xf]
    %v783 = vld [vmem:[#allocation6 + $0x48] sm:$0xf]
    %v784 = vld [vmem:[#allocation6 + $0x4c] sm:$0xf]
    %v785 = vld [vmem:[#allocation6 + $0x50] sm:$0xf]
    %v786 = vld [vmem:[#allocation6 + $0x54] sm:$0xf]
    %v787 = vld [vmem:[#allocation6 + $0x58] sm:$0xf]
    %v788 = vld [vmem:[#allocation6 + $0x5c] sm:$0xf]
    %v789 = vld [vmem:[#allocation6 + $0x60] sm:$0xf]
    %v790 = vld [vmem:[#allocation6 + $0x64] sm:$0xf]
    %v791 = vld [vmem:[#allocation6 + $0x68] sm:$0xf]
    %v792 = vld [vmem:[#allocation6 + $0x6c] sm:$0xf]
    %v793 = vld [vmem:[#allocation6 + $0x70] sm:$0xf]
    %v794 = vld [vmem:[#allocation6 + $0x74] sm:$0xf]
    %v795 = vld [vmem:[#allocation6 + $0x78] sm:$0xf]
    %v796 = vld [vmem:[#allocation6 + $0x7c] sm:$0xf]
    %v797 = vld [vmem:[#allocation6 + $0x80] sm:$0xf]
    %v798 = vld [vmem:[#allocation6 + $0x84] sm:$0xf]
    %v799 = vld [vmem:[#allocation6 + $0x88] sm:$0xf]
    %v800 = vld [vmem:[#allocation6 + $0x8c] sm:$0xf]
    %v801 = vld [vmem:[#allocation6 + $0x90] sm:$0xf]
    %v802 = vld [vmem:[#allocation6 + $0x94] sm:$0xf]
    %v803 = vld [vmem:[#allocation6 + $0x98] sm:$0xf]
    %v804 = vld [vmem:[#allocation6 + $0x9c] sm:$0xf]
    %v805 = vld [vmem:[#allocation6 + $0xa0] sm:$0xf]
    %v806 = vld [vmem:[#allocation6 + $0xa4] sm:$0xf]
    %v807 = vld [vmem:[#allocation6 + $0xa8] sm:$0xf]
    %v808 = vld [vmem:[#allocation6 + $0xac] sm:$0xf]
    %v809 = vld [vmem:[#allocation6 + $0xb0] sm:$0xf]
    %v810 = vld [vmem:[#allocation6 + $0xb4] sm:$0xf]
    %v811 = vld [vmem:[#allocation6 + $0xb8] sm:$0xf]
    %v812 = vld [vmem:[#allocation6 + $0xbc] sm:$0xf]
    %v813 = vld [vmem:[#allocation6 + $0xc0] sm:$0xf]
    %v814 = vld [vmem:[#allocation6 + $0xc4] sm:$0xf]
    %v815 = vld [vmem:[#allocation6 + $0xc8] sm:$0xf]
    %v816 = vld [vmem:[#allocation6 + $0xcc] sm:$0xf]
    %v817 = vld [vmem:[#allocation6 + $0xd0] sm:$0xf]
    %v818 = vld [vmem:[#allocation6 + $0xd4] sm:$0xf]
    %v819 = vld [vmem:[#allocation6 + $0xd8] sm:$0xf]
    %v820 = vld [vmem:[#allocation6 + $0xdc] sm:$0xf]
    %v821 = vld [vmem:[#allocation6 + $0xe0] sm:$0xf]
    %v822 = vld [vmem:[#allocation6 + $0xe4] sm:$0xf]
    %v823 = vld [vmem:[#allocation6 + $0xe8] sm:$0xf]
    %v824 = vld [vmem:[#allocation6 + $0xec] sm:$0xf]
    %v825 = vld [vmem:[#allocation6 + $0xf0] sm:$0xf]
    %v826 = vld [vmem:[#allocation6 + $0xf4] sm:$0xf]
    %v827 = vld [vmem:[#allocation6 + $0xf8] sm:$0xf]
    %v828 = vld [vmem:[#allocation6 + $0xfc] sm:$0xf]
    %v829 = vld [vmem:[#allocation6 + $0x100] sm:$0xf]
    %v830 = vld [vmem:[#allocation6 + $0x104] sm:$0xf]
    %v831 = vld [vmem:[#allocation6 + $0x108] sm:$0xf]
    %v832 = vld [vmem:[#allocation6 + $0x10c] sm:$0xf]
    %v833 = vld [vmem:[#allocation6 + $0x110] sm:$0xf]
    %v834 = vld [vmem:[#allocation6 + $0x114] sm:$0xf]
    %v835 = vld [vmem:[#allocation6 + $0x118] sm:$0xf]
    %v836 = vld [vmem:[#allocation6 + $0x11c] sm:$0xf]
    %v837 = vld [vmem:[#allocation6 + $0x120] sm:$0xf]
    %v838 = vld [vmem:[#allocation6 + $0x124] sm:$0xf]
    %v839 = vld [vmem:[#allocation6 + $0x128] sm:$0xf]
    %v840 = vld [vmem:[#allocation6 + $0x12c] sm:$0xf]
    %v841 = vld [vmem:[#allocation6 + $0x130] sm:$0xf]
    %v842 = vld [vmem:[#allocation6 + $0x134] sm:$0xf]
    %v843 = vld [vmem:[#allocation6 + $0x138] sm:$0xf]
    %v844 = vld [vmem:[#allocation6 + $0x13c] sm:$0xf]
    %v845 = vld [vmem:[#allocation6 + $0x140] sm:$0xf]
    %v846 = vld [vmem:[#allocation6 + $0x144] sm:$0xf]
    %v847 = vld [vmem:[#allocation6 + $0x148] sm:$0xf]
    %v848 = vld [vmem:[#allocation6 + $0x14c] sm:$0xf]
    %v849 = vld [vmem:[#allocation6 + $0x150] sm:$0xf]
    %v850 = vld [vmem:[#allocation6 + $0x154] sm:$0xf]
    %v851 = vld [vmem:[#allocation6 + $0x158] sm:$0xf]
    %v852 = vld [vmem:[#allocation6 + $0x15c] sm:$0xf]
    %v853 = vld [vmem:[#allocation6 + $0x160] sm:$0xf]
    %v854 = vld [vmem:[#allocation6 + $0x164] sm:$0xf]
    %v855 = vld [vmem:[#allocation6 + $0x168] sm:$0xf]
    %v856 = vld [vmem:[#allocation6 + $0x16c] sm:$0xf]
    %v857 = vld [vmem:[#allocation6 + $0x170] sm:$0xf]
    %v858 = vld [vmem:[#allocation6 + $0x174] sm:$0xf]
    %v859 = vld [vmem:[#allocation6 + $0x178] sm:$0xf]
    %v860 = vld [vmem:[#allocation6 + $0x17c] sm:$0xf]
    %v861 = vld [vmem:[#allocation6 + $0x180] sm:$0xf]
    %v862 = vld [vmem:[#allocation6 + $0x184] sm:$0xf]
    %v863 = vld [vmem:[#allocation6 + $0x188] sm:$0xf]
    %v864 = vld [vmem:[#allocation6 + $0x18c] sm:$0xf]
    %v865 = vld [vmem:[#allocation6 + $0x190] sm:$0xf]
    %v866 = vld [vmem:[#allocation6 + $0x194] sm:$0xf]
    %v867 = vld [vmem:[#allocation6 + $0x198] sm:$0xf]
    %v868 = vld [vmem:[#allocation6 + $0x19c] sm:$0xf]
    %v869 = vld [vmem:[#allocation6 + $0x1a0] sm:$0xf]
    %v870 = vld [vmem:[#allocation6 + $0x1a4] sm:$0xf]
    %v871 = vld [vmem:[#allocation6 + $0x1a8] sm:$0xf]
    %v872 = vld [vmem:[#allocation6 + $0x1ac] sm:$0xf]
    %v873 = vld [vmem:[#allocation6 + $0x1b0] sm:$0xf]
    %v874 = vld [vmem:[#allocation6 + $0x1b4] sm:$0xf]
    %v875 = vld [vmem:[#allocation6 + $0x1b8] sm:$0xf]
    %v876 = vld [vmem:[#allocation6 + $0x1bc] sm:$0xf]
    %v877 = vld [vmem:[#allocation6 + $0x1c0] sm:$0xf]
    %v878 = vld [vmem:[#allocation6 + $0x1c4] sm:$0xf]
    %v879 = vld [vmem:[#allocation6 + $0x1c8] sm:$0xf]
    %v880 = vld [vmem:[#allocation6 + $0x1cc] sm:$0xf]
    %v881 = vld [vmem:[#allocation6 + $0x1d0] sm:$0xf]
    %v882 = vld [vmem:[#allocation6 + $0x1d4] sm:$0xf]
    %v883 = vld [vmem:[#allocation6 + $0x1d8] sm:$0xf]
    %v884 = vld [vmem:[#allocation6 + $0x1dc] sm:$0xf]
    %v885 = vld [vmem:[#allocation6 + $0x1e0] sm:$0xf]
    %v886 = vld [vmem:[#allocation6 + $0x1e4] sm:$0xf]
    %v887 = vld [vmem:[#allocation6 + $0x1e8] sm:$0xf]
    %v888 = vld [vmem:[#allocation6 + $0x1ec] sm:$0xf]
    %v889 = vld [vmem:[#allocation6 + $0x1f0] sm:$0xf]
    %v890 = vld [vmem:[#allocation6 + $0x1f4] sm:$0xf]
    %v891 = vld [vmem:[#allocation6 + $0x1f8] sm:$0xf]
    %v892 = vld [vmem:[#allocation6 + $0x1fc] sm:$0xf]
    %v893 = vld [vmem:[%s2] sm:$0x1]
    %v895 = vperm.slane %v893, 0
    %v1025 = vunpack.c.l.b16 %v765
    %v1026 = vunpack.c.l.b16 %v766
    %v1027 = vunpack.c.l.b16 %v767
    %v1028 = vunpack.c.l.b16 %v768
    %v1029 = vunpack.c.l.b16 %v769
    %v1030 = vunpack.c.l.b16 %v770
    %v1031 = vunpack.c.l.b16 %v771
    %v1032 = vunpack.c.l.b16 %v772
    %v1033 = vunpack.c.l.b16 %v773
    %v1034 = vunpack.c.l.b16 %v774
    %v1035 = vunpack.c.l.b16 %v775
    %v1036 = vunpack.c.l.b16 %v776
    %v1037 = vunpack.c.l.b16 %v777
    %v1038 = vunpack.c.l.b16 %v778
    %v1039 = vunpack.c.l.b16 %v779
    %v1040 = vunpack.c.l.b16 %v780
    %v1041 = vunpack.c.l.b16 %v781
    %v1042 = vunpack.c.l.b16 %v782
    %v1043 = vunpack.c.l.b16 %v783
    %v1044 = vunpack.c.l.b16 %v784
    %v1045 = vunpack.c.l.b16 %v785
    %v1046 = vunpack.c.l.b16 %v786
    %v1047 = vunpack.c.l.b16 %v787
    %v1048 = vunpack.c.l.b16 %v788
    %v1049 = vunpack.c.l.b16 %v789
    %v1050 = vunpack.c.l.b16 %v790
    %v1051 = vunpack.c.l.b16 %v791
    %v1052 = vunpack.c.l.b16 %v792
    %v1053 = vunpack.c.l.b16 %v793
    %v1054 = vunpack.c.l.b16 %v794
    %v1055 = vunpack.c.l.b16 %v795
    %v1056 = vunpack.c.l.b16 %v796
    %v1057 = vunpack.c.l.b16 %v797
    %v1058 = vunpack.c.l.b16 %v798
    %v1059 = vunpack.c.l.b16 %v799
    %v1060 = vunpack.c.l.b16 %v800
    %v1061 = vunpack.c.l.b16 %v801
    %v1062 = vunpack.c.l.b16 %v802
    %v1063 = vunpack.c.l.b16 %v803
    %v1064 = vunpack.c.l.b16 %v804
    %v1065 = vunpack.c.l.b16 %v805
    %v1066 = vunpack.c.l.b16 %v806
    %v1067 = vunpack.c.l.b16 %v807
    %v1068 = vunpack.c.l.b16 %v808
    %v1069 = vunpack.c.l.b16 %v809
    %v1070 = vunpack.c.l.b16 %v810
    %v1071 = vunpack.c.l.b16 %v811
    %v1072 = vunpack.c.l.b16 %v812
    %v1073 = vunpack.c.l.b16 %v813
    %v1074 = vunpack.c.l.b16 %v814
    %v1075 = vunpack.c.l.b16 %v815
    %v1076 = vunpack.c.l.b16 %v816
    %v1077 = vunpack.c.l.b16 %v817
    %v1078 = vunpack.c.l.b16 %v818
    %v1079 = vunpack.c.l.b16 %v819
    %v1080 = vunpack.c.l.b16 %v820
    %v1081 = vunpack.c.l.b16 %v821
    %v1082 = vunpack.c.l.b16 %v822
    %v1083 = vunpack.c.l.b16 %v823
    %v1084 = vunpack.c.l.b16 %v824
    %v1085 = vunpack.c.l.b16 %v825
    %v1086 = vunpack.c.l.b16 %v826
    %v1087 = vunpack.c.l.b16 %v827
    %v1088 = vunpack.c.l.b16 %v828
    %v1089 = vunpack.c.l.b16 %v829
    %v1090 = vunpack.c.l.b16 %v830
    %v1091 = vunpack.c.l.b16 %v831
    %v1092 = vunpack.c.l.b16 %v832
    %v1093 = vunpack.c.l.b16 %v833
    %v1094 = vunpack.c.l.b16 %v834
    %v1095 = vunpack.c.l.b16 %v835
    %v1096 = vunpack.c.l.b16 %v836
    %v1097 = vunpack.c.l.b16 %v837
    %v1098 = vunpack.c.l.b16 %v838
    %v1099 = vunpack.c.l.b16 %v839
    %v1100 = vunpack.c.l.b16 %v840
    %v1101 = vunpack.c.l.b16 %v841
    %v1102 = vunpack.c.l.b16 %v842
    %v1103 = vunpack.c.l.b16 %v843
    %v1104 = vunpack.c.l.b16 %v844
    %v1105 = vunpack.c.l.b16 %v845
    %v1106 = vunpack.c.l.b16 %v846
    %v1107 = vunpack.c.l.b16 %v847
    %v1108 = vunpack.c.l.b16 %v848
    %v1109 = vunpack.c.l.b16 %v849
    %v1110 = vunpack.c.l.b16 %v850
    %v1111 = vunpack.c.l.b16 %v851
    %v1112 = vunpack.c.l.b16 %v852
    %v1113 = vunpack.c.l.b16 %v853
    %v1114 = vunpack.c.l.b16 %v854
    %v1115 = vunpack.c.l.b16 %v855
    %v1116 = vunpack.c.l.b16 %v856
    %v1117 = vunpack.c.l.b16 %v857
    %v1118 = vunpack.c.l.b16 %v858
    %v1119 = vunpack.c.l.b16 %v859
    %v1120 = vunpack.c.l.b16 %v860
    %v1121 = vunpack.c.l.b16 %v861
    %v1122 = vunpack.c.l.b16 %v862
    %v1123 = vunpack.c.l.b16 %v863
    %v1124 = vunpack.c.l.b16 %v864
    %v1125 = vunpack.c.l.b16 %v865
    %v1126 = vunpack.c.l.b16 %v866
    %v1127 = vunpack.c.l.b16 %v867
    %v1128 = vunpack.c.l.b16 %v868
    %v1129 = vunpack.c.l.b16 %v869
    %v1130 = vunpack.c.l.b16 %v870
    %v1131 = vunpack.c.l.b16 %v871
    %v1132 = vunpack.c.l.b16 %v872
    %v1133 = vunpack.c.l.b16 %v873
    %v1134 = vunpack.c.l.b16 %v874
    %v1135 = vunpack.c.l.b16 %v875
    %v1136 = vunpack.c.l.b16 %v876
    %v1137 = vunpack.c.l.b16 %v877
    %v1138 = vunpack.c.l.b16 %v878
    %v1139 = vunpack.c.l.b16 %v879
    %v1140 = vunpack.c.l.b16 %v880
    %v1141 = vunpack.c.l.b16 %v881
    %v1142 = vunpack.c.l.b16 %v882
    %v1143 = vunpack.c.l.b16 %v883
    %v1144 = vunpack.c.l.b16 %v884
    %v1145 = vunpack.c.l.b16 %v885
    %v1146 = vunpack.c.l.b16 %v886
    %v1147 = vunpack.c.l.b16 %v887
    %v1148 = vunpack.c.l.b16 %v888
    %v1149 = vunpack.c.l.b16 %v889
    %v1150 = vunpack.c.l.b16 %v890
    %v1151 = vunpack.c.l.b16 %v891
    %v1152 = vunpack.c.l.b16 %v892
    %v1153 = vpack.c.b16 %v1026, %v1025
    %v1154 = vpack.c.b16 %v1028, %v1027
    %v1155 = vpack.c.b16 %v1030, %v1029
    %v1156 = vpack.c.b16 %v1032, %v1031
    %v1157 = vpack.c.b16 %v1034, %v1033
    %v1158 = vpack.c.b16 %v1036, %v1035
    %v1159 = vpack.c.b16 %v1038, %v1037
    %v1160 = vpack.c.b16 %v1040, %v1039
    %v1161 = vpack.c.b16 %v1042, %v1041
    %v1162 = vpack.c.b16 %v1044, %v1043
    %v1163 = vpack.c.b16 %v1046, %v1045
    %v1164 = vpack.c.b16 %v1048, %v1047
    %v1165 = vpack.c.b16 %v1050, %v1049
    %v1166 = vpack.c.b16 %v1052, %v1051
    %v1167 = vpack.c.b16 %v1054, %v1053
    %v1168 = vpack.c.b16 %v1056, %v1055
    %v1169 = vpack.c.b16 %v1058, %v1057
    %v1170 = vpack.c.b16 %v1060, %v1059
    %v1171 = vpack.c.b16 %v1062, %v1061
    %v1172 = vpack.c.b16 %v1064, %v1063
    %v1173 = vpack.c.b16 %v1066, %v1065
    %v1174 = vpack.c.b16 %v1068, %v1067
    %v1175 = vpack.c.b16 %v1070, %v1069
    %v1176 = vpack.c.b16 %v1072, %v1071
    %v1177 = vpack.c.b16 %v1074, %v1073
    %v1178 = vpack.c.b16 %v1076, %v1075
    %v1179 = vpack.c.b16 %v1078, %v1077
    %v1180 = vpack.c.b16 %v1080, %v1079
    %v1181 = vpack.c.b16 %v1082, %v1081
    %v1182 = vpack.c.b16 %v1084, %v1083
    %v1183 = vpack.c.b16 %v1086, %v1085
    %v1184 = vpack.c.b16 %v1088, %v1087
    %v1185 = vpack.c.b16 %v1090, %v1089
    %v1186 = vpack.c.b16 %v1092, %v1091
    %v1187 = vpack.c.b16 %v1094, %v1093
    %v1188 = vpack.c.b16 %v1096, %v1095
    %v1189 = vpack.c.b16 %v1098, %v1097
    %v1190 = vpack.c.b16 %v1100, %v1099
    %v1191 = vpack.c.b16 %v1102, %v1101
    %v1192 = vpack.c.b16 %v1104, %v1103
    %v1193 = vpack.c.b16 %v1106, %v1105
    %v1194 = vpack.c.b16 %v1108, %v1107
    %v1195 = vpack.c.b16 %v1110, %v1109
    %v1196 = vpack.c.b16 %v1112, %v1111
    %v1197 = vpack.c.b16 %v1114, %v1113
    %v1198 = vpack.c.b16 %v1116, %v1115
    %v1199 = vpack.c.b16 %v1118, %v1117
    %v1200 = vpack.c.b16 %v1120, %v1119
    %v1201 = vpack.c.b16 %v1122, %v1121
    %v1202 = vpack.c.b16 %v1124, %v1123
    %v1203 = vpack.c.b16 %v1126, %v1125
    %v1204 = vpack.c.b16 %v1128, %v1127
    %v1205 = vpack.c.b16 %v1130, %v1129
    %v1206 = vpack.c.b16 %v1132, %v1131
    %v1207 = vpack.c.b16 %v1134, %v1133
    %v1208 = vpack.c.b16 %v1136, %v1135
    %v1209 = vpack.c.b16 %v1138, %v1137
    %v1210 = vpack.c.b16 %v1140, %v1139
    %v1211 = vpack.c.b16 %v1142, %v1141
    %v1212 = vpack.c.b16 %v1144, %v1143
    %v1213 = vpack.c.b16 %v1146, %v1145
    %v1214 = vpack.c.b16 %v1148, %v1147
    %v1215 = vpack.c.b16 %v1150, %v1149
    %v1216 = vpack.c.b16 %v1152, %v1151
    %1281 = vmatpush.bf16.msra.mxu0 %v1160
    %1282 = vmatpush.bf16.msra.mxu0 %v1159
    %1283 = vmatpush.bf16.msra.mxu0 %v1158
    %1284 = vmatpush.bf16.msra.mxu0 %v1157
    %1285 = vmatpush.bf16.msra.mxu0 %v1156
    %1286 = vmatpush.bf16.msra.mxu0 %v1155
    %1287 = vmatpush.bf16.msra.mxu0 %v1154
    %1288 = vmatpush.bf16.msra.mxu0 %v1153
    %1289 = vmatmul.bf16.gmra.mxu0 %v701
    %v1290 = vpop.f32.mrf.mxu0
    %v1291 = vadd.f32 %v895, %v1290
    %v1292 = vpop.f32.mrf.mxu0
    %v1293 = vadd.f32 %v895, %v1292
    %1294 = vmatmul.bf16.gmra.mxu0 %v709
    %v1295 = vpop.f32.mrf.mxu0
    %v1296 = vadd.f32 %v895, %v1295
    %v1297 = vpop.f32.mrf.mxu0
    %v1298 = vadd.f32 %v895, %v1297
    %1299 = vmatmul.bf16.gmra.mxu0 %v717
    %v1300 = vpop.f32.mrf.mxu0
    %v1301 = vadd.f32 %v895, %v1300
    %v1302 = vpop.f32.mrf.mxu0
    %v1303 = vadd.f32 %v895, %v1302
    %1304 = vmatmul.bf16.gmra.mxu0 %v725
    %v1305 = vpop.f32.mrf.mxu0
    %v1306 = vadd.f32 %v895, %v1305
    %v1307 = vpop.f32.mrf.mxu0
    %v1308 = vadd.f32 %v895, %v1307
    %1309 = vmatmul.bf16.gmra.mxu0 %v733
    %v1310 = vpop.f32.mrf.mxu0
    %v1311 = vadd.f32 %v895, %v1310
    %v1312 = vpop.f32.mrf.mxu0
    %v1313 = vadd.f32 %v895, %v1312
    %1314 = vmatmul.bf16.gmra.mxu0 %v741
    %v1315 = vpop.f32.mrf.mxu0
    %v1316 = vadd.f32 %v895, %v1315
    %v1317 = vpop.f32.mrf.mxu0
    %v1318 = vadd.f32 %v895, %v1317
    %1319 = vmatmul.bf16.gmra.mxu0 %v749
    %v1320 = vpop.f32.mrf.mxu0
    %v1321 = vadd.f32 %v895, %v1320
    %v1322 = vpop.f32.mrf.mxu0
    %v1323 = vadd.f32 %v895, %v1322
    %1324 = vmatmul.bf16.gmra.mxu0 %v757
    %v1325 = vpop.f32.mrf.mxu0
    %v1326 = vadd.f32 %v895, %v1325
    %v1327 = vpop.f32.mrf.mxu0
    %v1328 = vadd.f32 %v895, %v1327
    %1329 = vdwg.mxu0
    %1330 = vmatpush.bf16.msra.mxu0 %v1168
    %1331 = vmatpush.bf16.msra.mxu0 %v1167
    %1332 = vmatpush.bf16.msra.mxu0 %v1166
    %1333 = vmatpush.bf16.msra.mxu0 %v1165
    %1334 = vmatpush.bf16.msra.mxu0 %v1164
    %1335 = vmatpush.bf16.msra.mxu0 %v1163
    %1336 = vmatpush.bf16.msra.mxu0 %v1162
    %1337 = vmatpush.bf16.msra.mxu0 %v1161
    %1338 = vmatmul.bf16.gmra.mxu0 %v702
    %v1339 = vpop.f32.mrf.mxu0
    %v1340 = vadd.f32 %v1291, %v1339
    %v1341 = vpop.f32.mrf.mxu0
    %v1342 = vadd.f32 %v1293, %v1341
    %1343 = vmatmul.bf16.gmra.mxu0 %v710
    %v1344 = vpop.f32.mrf.mxu0
    %v1345 = vadd.f32 %v1296, %v1344
    %v1346 = vpop.f32.mrf.mxu0
    %v1347 = vadd.f32 %v1298, %v1346
    %1348 = vmatmul.bf16.gmra.mxu0 %v718
    %v1349 = vpop.f32.mrf.mxu0
    %v1350 = vadd.f32 %v1301, %v1349
    %v1351 = vpop.f32.mrf.mxu0
    %v1352 = vadd.f32 %v1303, %v1351
    %1353 = vmatmul.bf16.gmra.mxu0 %v726
    %v1354 = vpop.f32.mrf.mxu0
    %v1355 = vadd.f32 %v1306, %v1354
    %v1356 = vpop.f32.mrf.mxu0
    %v1357 = vadd.f32 %v1308, %v1356
    %1358 = vmatmul.bf16.gmra.mxu0 %v734
    %v1359 = vpop.f32.mrf.mxu0
    %v1360 = vadd.f32 %v1311, %v1359
    %v1361 = vpop.f32.mrf.mxu0
    %v1362 = vadd.f32 %v1313, %v1361
    %1363 = vmatmul.bf16.gmra.mxu0 %v742
    %v1364 = vpop.f32.mrf.mxu0
    %v1365 = vadd.f32 %v1316, %v1364
    %v1366 = vpop.f32.mrf.mxu0
    %v1367 = vadd.f32 %v1318, %v1366
    %1368 = vmatmul.bf16.gmra.mxu0 %v750
    %v1369 = vpop.f32.mrf.mxu0
    %v1370 = vadd.f32 %v1321, %v1369
    %v1371 = vpop.f32.mrf.mxu0
    %v1372 = vadd.f32 %v1323, %v1371
    %1373 = vmatmul.bf16.gmra.mxu0 %v758
    %v1374 = vpop.f32.mrf.mxu0
    %v1375 = vadd.f32 %v1326, %v1374
    %v1376 = vpop.f32.mrf.mxu0
    %v1377 = vadd.f32 %v1328, %v1376
    %1378 = vdwg.mxu0
    %1379 = vmatpush.bf16.msra.mxu0 %v1176
    %1380 = vmatpush.bf16.msra.mxu0 %v1175
    %1381 = vmatpush.bf16.msra.mxu0 %v1174
    %1382 = vmatpush.bf16.msra.mxu0 %v1173
    %1383 = vmatpush.bf16.msra.mxu0 %v1172
    %1384 = vmatpush.bf16.msra.mxu0 %v1171
    %1385 = vmatpush.bf16.msra.mxu0 %v1170
    %1386 = vmatpush.bf16.msra.mxu0 %v1169
    %1387 = vmatmul.bf16.gmra.mxu0 %v703
    %v1388 = vpop.f32.mrf.mxu0
    %v1389 = vadd.f32 %v1340, %v1388
    %v1390 = vpop.f32.mrf.mxu0
    %v1391 = vadd.f32 %v1342, %v1390
    %1392 = vmatmul.bf16.gmra.mxu0 %v711
    %v1393 = vpop.f32.mrf.mxu0
    %v1394 = vadd.f32 %v1345, %v1393
    %v1395 = vpop.f32.mrf.mxu0
    %v1396 = vadd.f32 %v1347, %v1395
    %1397 = vmatmul.bf16.gmra.mxu0 %v719
    %v1398 = vpop.f32.mrf.mxu0
    %v1399 = vadd.f32 %v1350, %v1398
    %v1400 = vpop.f32.mrf.mxu0
    %v1401 = vadd.f32 %v1352, %v1400
    %1402 = vmatmul.bf16.gmra.mxu0 %v727
    %v1403 = vpop.f32.mrf.mxu0
    %v1404 = vadd.f32 %v1355, %v1403
    %v1405 = vpop.f32.mrf.mxu0
    %v1406 = vadd.f32 %v1357, %v1405
    %1407 = vmatmul.bf16.gmra.mxu0 %v735
    %v1408 = vpop.f32.mrf.mxu0
    %v1409 = vadd.f32 %v1360, %v1408
    %v1410 = vpop.f32.mrf.mxu0
    %v1411 = vadd.f32 %v1362, %v1410
    %1412 = vmatmul.bf16.gmra.mxu0 %v743
    %v1413 = vpop.f32.mrf.mxu0
    %v1414 = vadd.f32 %v1365, %v1413
    %v1415 = vpop.f32.mrf.mxu0
    %v1416 = vadd.f32 %v1367, %v1415
    %1417 = vmatmul.bf16.gmra.mxu0 %v751
    %v1418 = vpop.f32.mrf.mxu0
    %v1419 = vadd.f32 %v1370, %v1418
    %v1420 = vpop.f32.mrf.mxu0
    %v1421 = vadd.f32 %v1372, %v1420
    %1422 = vmatmul.bf16.gmra.mxu0 %v759
    %v1423 = vpop.f32.mrf.mxu0
    %v1424 = vadd.f32 %v1375, %v1423
    %v1425 = vpop.f32.mrf.mxu0
    %v1426 = vadd.f32 %v1377, %v1425
    %1427 = vdwg.mxu0
    %1428 = vmatpush.bf16.msra.mxu0 %v1184
    %1429 = vmatpush.bf16.msra.mxu0 %v1183
    %1430 = vmatpush.bf16.msra.mxu0 %v1182
    %1431 = vmatpush.bf16.msra.mxu0 %v1181
    %1432 = vmatpush.bf16.msra.mxu0 %v1180
    %1433 = vmatpush.bf16.msra.mxu0 %v1179
    %1434 = vmatpush.bf16.msra.mxu0 %v1178
    %1435 = vmatpush.bf16.msra.mxu0 %v1177
    %1436 = vmatmul.bf16.gmra.mxu0 %v704
    %v1437 = vpop.f32.mrf.mxu0
    %v1438 = vadd.f32 %v1389, %v1437
    %v1439 = vpop.f32.mrf.mxu0
    %v1440 = vadd.f32 %v1391, %v1439
    %1441 = vmatmul.bf16.gmra.mxu0 %v712
    %v1442 = vpop.f32.mrf.mxu0
    %v1443 = vadd.f32 %v1394, %v1442
    %v1444 = vpop.f32.mrf.mxu0
    %v1445 = vadd.f32 %v1396, %v1444
    %1446 = vmatmul.bf16.gmra.mxu0 %v720
    %v1447 = vpop.f32.mrf.mxu0
    %v1448 = vadd.f32 %v1399, %v1447
    %v1449 = vpop.f32.mrf.mxu0
    %v1450 = vadd.f32 %v1401, %v1449
    %1451 = vmatmul.bf16.gmra.mxu0 %v728
    %v1452 = vpop.f32.mrf.mxu0
    %v1453 = vadd.f32 %v1404, %v1452
    %v1454 = vpop.f32.mrf.mxu0
    %v1455 = vadd.f32 %v1406, %v1454
    %1456 = vmatmul.bf16.gmra.mxu0 %v736
    %v1457 = vpop.f32.mrf.mxu0
    %v1458 = vadd.f32 %v1409, %v1457
    %v1459 = vpop.f32.mrf.mxu0
    %v1460 = vadd.f32 %v1411, %v1459
    %1461 = vmatmul.bf16.gmra.mxu0 %v744
    %v1462 = vpop.f32.mrf.mxu0
    %v1463 = vadd.f32 %v1414, %v1462
    %v1464 = vpop.f32.mrf.mxu0
    %v1465 = vadd.f32 %v1416, %v1464
    %1466 = vmatmul.bf16.gmra.mxu0 %v752
    %v1467 = vpop.f32.mrf.mxu0
    %v1468 = vadd.f32 %v1419, %v1467
    %v1469 = vpop.f32.mrf.mxu0
    %v1470 = vadd.f32 %v1421, %v1469
    %1471 = vmatmul.bf16.gmra.mxu0 %v760
    %v1472 = vpop.f32.mrf.mxu0
    %v1473 = vadd.f32 %v1424, %v1472
    %v1474 = vpop.f32.mrf.mxu0
    %v1475 = vadd.f32 %v1426, %v1474
    %1476 = vdwg.mxu0
    %1477 = vmatpush.bf16.msra.mxu0 %v1192
    %1478 = vmatpush.bf16.msra.mxu0 %v1191
    %1479 = vmatpush.bf16.msra.mxu0 %v1190
    %1480 = vmatpush.bf16.msra.mxu0 %v1189
    %1481 = vmatpush.bf16.msra.mxu0 %v1188
    %1482 = vmatpush.bf16.msra.mxu0 %v1187
    %1483 = vmatpush.bf16.msra.mxu0 %v1186
    %1484 = vmatpush.bf16.msra.mxu0 %v1185
    %1485 = vmatmul.bf16.gmra.mxu0 %v705
    %v1486 = vpop.f32.mrf.mxu0
    %v1487 = vadd.f32 %v1438, %v1486
    %v1488 = vpop.f32.mrf.mxu0
    %v1489 = vadd.f32 %v1440, %v1488
    %1490 = vmatmul.bf16.gmra.mxu0 %v713
    %v1491 = vpop.f32.mrf.mxu0
    %v1492 = vadd.f32 %v1443, %v1491
    %v1493 = vpop.f32.mrf.mxu0
    %v1494 = vadd.f32 %v1445, %v1493
    %1495 = vmatmul.bf16.gmra.mxu0 %v721
    %v1496 = vpop.f32.mrf.mxu0
    %v1497 = vadd.f32 %v1448, %v1496
    %v1498 = vpop.f32.mrf.mxu0
    %v1499 = vadd.f32 %v1450, %v1498
    %1500 = vmatmul.bf16.gmra.mxu0 %v729
    %v1501 = vpop.f32.mrf.mxu0
    %v1502 = vadd.f32 %v1453, %v1501
    %v1503 = vpop.f32.mrf.mxu0
    %v1504 = vadd.f32 %v1455, %v1503
    %1505 = vmatmul.bf16.gmra.mxu0 %v737
    %v1506 = vpop.f32.mrf.mxu0
    %v1507 = vadd.f32 %v1458, %v1506
    %v1508 = vpop.f32.mrf.mxu0
    %v1509 = vadd.f32 %v1460, %v1508
    %1510 = vmatmul.bf16.gmra.mxu0 %v745
    %v1511 = vpop.f32.mrf.mxu0
    %v1512 = vadd.f32 %v1463, %v1511
    %v1513 = vpop.f32.mrf.mxu0
    %v1514 = vadd.f32 %v1465, %v1513
    %1515 = vmatmul.bf16.gmra.mxu0 %v753
    %v1516 = vpop.f32.mrf.mxu0
    %v1517 = vadd.f32 %v1468, %v1516
    %v1518 = vpop.f32.mrf.mxu0
    %v1519 = vadd.f32 %v1470, %v1518
    %1520 = vmatmul.bf16.gmra.mxu0 %v761
    %v1521 = vpop.f32.mrf.mxu0
    %v1522 = vadd.f32 %v1473, %v1521
    %v1523 = vpop.f32.mrf.mxu0
    %v1524 = vadd.f32 %v1475, %v1523
    %1525 = vdwg.mxu0
    %1526 = vmatpush.bf16.msra.mxu0 %v1200
    %1527 = vmatpush.bf16.msra.mxu0 %v1199
    %1528 = vmatpush.bf16.msra.mxu0 %v1198
    %1529 = vmatpush.bf16.msra.mxu0 %v1197
    %1530 = vmatpush.bf16.msra.mxu0 %v1196
    %1531 = vmatpush.bf16.msra.mxu0 %v1195
    %1532 = vmatpush.bf16.msra.mxu0 %v1194
    %1533 = vmatpush.bf16.msra.mxu0 %v1193
    %1534 = vmatmul.bf16.gmra.mxu0 %v706
    %v1535 = vpop.f32.mrf.mxu0
    %v1536 = vadd.f32 %v1487, %v1535
    %v1537 = vpop.f32.mrf.mxu0
    %v1538 = vadd.f32 %v1489, %v1537
    %1539 = vmatmul.bf16.gmra.mxu0 %v714
    %v1540 = vpop.f32.mrf.mxu0
    %v1541 = vadd.f32 %v1492, %v1540
    %v1542 = vpop.f32.mrf.mxu0
    %v1543 = vadd.f32 %v1494, %v1542
    %1544 = vmatmul.bf16.gmra.mxu0 %v722
    %v1545 = vpop.f32.mrf.mxu0
    %v1546 = vadd.f32 %v1497, %v1545
    %v1547 = vpop.f32.mrf.mxu0
    %v1548 = vadd.f32 %v1499, %v1547
    %1549 = vmatmul.bf16.gmra.mxu0 %v730
    %v1550 = vpop.f32.mrf.mxu0
    %v1551 = vadd.f32 %v1502, %v1550
    %v1552 = vpop.f32.mrf.mxu0
    %v1553 = vadd.f32 %v1504, %v1552
    %1554 = vmatmul.bf16.gmra.mxu0 %v738
    %v1555 = vpop.f32.mrf.mxu0
    %v1556 = vadd.f32 %v1507, %v1555
    %v1557 = vpop.f32.mrf.mxu0
    %v1558 = vadd.f32 %v1509, %v1557
    %1559 = vmatmul.bf16.gmra.mxu0 %v746
    %v1560 = vpop.f32.mrf.mxu0
    %v1561 = vadd.f32 %v1512, %v1560
    %v1562 = vpop.f32.mrf.mxu0
    %v1563 = vadd.f32 %v1514, %v1562
    %1564 = vmatmul.bf16.gmra.mxu0 %v754
    %v1565 = vpop.f32.mrf.mxu0
    %v1566 = vadd.f32 %v1517, %v1565
    %v1567 = vpop.f32.mrf.mxu0
    %v1568 = vadd.f32 %v1519, %v1567
    %1569 = vmatmul.bf16.gmra.mxu0 %v762
    %v1570 = vpop.f32.mrf.mxu0
    %v1571 = vadd.f32 %v1522, %v1570
    %v1572 = vpop.f32.mrf.mxu0
    %v1573 = vadd.f32 %v1524, %v1572
    %1574 = vdwg.mxu0
    %1575 = vmatpush.bf16.msra.mxu0 %v1208
    %1576 = vmatpush.bf16.msra.mxu0 %v1207
    %1577 = vmatpush.bf16.msra.mxu0 %v1206
    %1578 = vmatpush.bf16.msra.mxu0 %v1205
    %1579 = vmatpush.bf16.msra.mxu0 %v1204
    %1580 = vmatpush.bf16.msra.mxu0 %v1203
    %1581 = vmatpush.bf16.msra.mxu0 %v1202
    %1582 = vmatpush.bf16.msra.mxu0 %v1201
    %1583 = vmatmul.bf16.gmra.mxu0 %v707
    %v1584 = vpop.f32.mrf.mxu0
    %v1585 = vadd.f32 %v1536, %v1584
    %v1586 = vpop.f32.mrf.mxu0
    %v1587 = vadd.f32 %v1538, %v1586
    %1588 = vmatmul.bf16.gmra.mxu0 %v715
    %v1589 = vpop.f32.mrf.mxu0
    %v1590 = vadd.f32 %v1541, %v1589
    %v1591 = vpop.f32.mrf.mxu0
    %v1592 = vadd.f32 %v1543, %v1591
    %1593 = vmatmul.bf16.gmra.mxu0 %v723
    %v1594 = vpop.f32.mrf.mxu0
    %v1595 = vadd.f32 %v1546, %v1594
    %v1596 = vpop.f32.mrf.mxu0
    %v1597 = vadd.f32 %v1548, %v1596
    %1598 = vmatmul.bf16.gmra.mxu0 %v731
    %v1599 = vpop.f32.mrf.mxu0
    %v1600 = vadd.f32 %v1551, %v1599
    %v1601 = vpop.f32.mrf.mxu0
    %v1602 = vadd.f32 %v1553, %v1601
    %1603 = vmatmul.bf16.gmra.mxu0 %v739
    %v1604 = vpop.f32.mrf.mxu0
    %v1605 = vadd.f32 %v1556, %v1604
    %v1606 = vpop.f32.mrf.mxu0
    %v1607 = vadd.f32 %v1558, %v1606
    %1608 = vmatmul.bf16.gmra.mxu0 %v747
    %v1609 = vpop.f32.mrf.mxu0
    %v1610 = vadd.f32 %v1561, %v1609
    %v1611 = vpop.f32.mrf.mxu0
    %v1612 = vadd.f32 %v1563, %v1611
    %1613 = vmatmul.bf16.gmra.mxu0 %v755
    %v1614 = vpop.f32.mrf.mxu0
    %v1615 = vadd.f32 %v1566, %v1614
    %v1616 = vpop.f32.mrf.mxu0
    %v1617 = vadd.f32 %v1568, %v1616
    %1618 = vmatmul.bf16.gmra.mxu0 %v763
    %v1619 = vpop.f32.mrf.mxu0
    %v1620 = vadd.f32 %v1571, %v1619
    %v1621 = vpop.f32.mrf.mxu0
    %v1622 = vadd.f32 %v1573, %v1621
    %1623 = vdwg.mxu0
    %1624 = vmatpush.bf16.msra.mxu0 %v1216
    %1625 = vmatpush.bf16.msra.mxu0 %v1215
    %1626 = vmatpush.bf16.msra.mxu0 %v1214
    %1627 = vmatpush.bf16.msra.mxu0 %v1213
    %1628 = vmatpush.bf16.msra.mxu0 %v1212
    %1629 = vmatpush.bf16.msra.mxu0 %v1211
    %1630 = vmatpush.bf16.msra.mxu0 %v1210
    %1631 = vmatpush.bf16.msra.mxu0 %v1209
    %1632 = vmatmul.bf16.gmra.mxu0 %v708
    %v1633 = vpop.f32.mrf.mxu0
    %v1634 = vadd.f32 %v1585, %v1633
    %v1635 = vpop.f32.mrf.mxu0
    %v1636 = vadd.f32 %v1587, %v1635
    %1637 = vmatmul.bf16.gmra.mxu0 %v716
    %v1638 = vpop.f32.mrf.mxu0
    %v1639 = vadd.f32 %v1590, %v1638
    %v1640 = vpop.f32.mrf.mxu0
    %v1641 = vadd.f32 %v1592, %v1640
    %1642 = vmatmul.bf16.gmra.mxu0 %v724
    %v1643 = vpop.f32.mrf.mxu0
    %v1644 = vadd.f32 %v1595, %v1643
    %v1645 = vpop.f32.mrf.mxu0
    %v1646 = vadd.f32 %v1597, %v1645
    %1647 = vmatmul.bf16.gmra.mxu0 %v732
    %v1648 = vpop.f32.mrf.mxu0
    %v1649 = vadd.f32 %v1600, %v1648
    %v1650 = vpop.f32.mrf.mxu0
    %v1651 = vadd.f32 %v1602, %v1650
    %1652 = vmatmul.bf16.gmra.mxu0 %v740
    %v1653 = vpop.f32.mrf.mxu0
    %v1654 = vadd.f32 %v1605, %v1653
    %v1655 = vpop.f32.mrf.mxu0
    %v1656 = vadd.f32 %v1607, %v1655
    %1657 = vmatmul.bf16.gmra.mxu0 %v748
    %v1658 = vpop.f32.mrf.mxu0
    %v1659 = vadd.f32 %v1610, %v1658
    %v1660 = vpop.f32.mrf.mxu0
    %v1661 = vadd.f32 %v1612, %v1660
    %1662 = vmatmul.bf16.gmra.mxu0 %v756
    %v1663 = vpop.f32.mrf.mxu0
    %v1664 = vadd.f32 %v1615, %v1663
    %v1665 = vpop.f32.mrf.mxu0
    %v1666 = vadd.f32 %v1617, %v1665
    %1667 = vmatmul.bf16.gmra.mxu0 %v764
    %v1668 = vpop.f32.mrf.mxu0
    %v1669 = vadd.f32 %v1620, %v1668
    %v1670 = vpop.f32.mrf.mxu0
    %v1671 = vadd.f32 %v1622, %v1670
    %1672 = vdwg.mxu0
    %v1673 = vmax.f32 %v1634, 0.0
    %v1674 = vmax.f32 %v1636, 0.0
    %v1675 = vmax.f32 %v1639, 0.0
    %v1676 = vmax.f32 %v1641, 0.0
    %v1677 = vmax.f32 %v1644, 0.0
    %v1678 = vmax.f32 %v1646, 0.0
    %v1679 = vmax.f32 %v1649, 0.0
    %v1680 = vmax.f32 %v1651, 0.0
    %v1681 = vmax.f32 %v1654, 0.0
    %v1682 = vmax.f32 %v1656, 0.0
    %v1683 = vmax.f32 %v1659, 0.0
    %v1684 = vmax.f32 %v1661, 0.0
    %v1685 = vmax.f32 %v1664, 0.0
    %v1686 = vmax.f32 %v1666, 0.0
    %v1687 = vmax.f32 %v1669, 0.0
    %v1688 = vmax.f32 %v1671, 0.0
    %v1689 = vld [vmem:[%s3] sm:$0x1]
    %v1691 = vperm.slane %v1689, 0
    %v1693 = vmul.f32 %v1673, %v1691
    %v1694 = vmul.f32 %v1674, %v1691
    %v1695 = vmul.f32 %v1675, %v1691
    %v1696 = vmul.f32 %v1676, %v1691
    %v1697 = vmul.f32 %v1677, %v1691
    %v1698 = vmul.f32 %v1678, %v1691
    %v1699 = vmul.f32 %v1679, %v1691
    %v1700 = vmul.f32 %v1680, %v1691
    %v1701 = vmul.f32 %v1681, %v1691
    %v1702 = vmul.f32 %v1682, %v1691
    %v1703 = vmul.f32 %v1683, %v1691
    %v1704 = vmul.f32 %v1684, %v1691
    %v1705 = vmul.f32 %v1685, %v1691
    %v1706 = vmul.f32 %v1686, %v1691
    %v1707 = vmul.f32 %v1687, %v1691
    %v1708 = vmul.f32 %v1688, %v1691
    %1709 = vadd.xlane.f32.xlu0 %v1693
    %v1710 = vpop.xlane.xlu0 %1709
    %1711 = vadd.xlane.f32.xlu0 %v1694
    %v1712 = vpop.xlane.xlu0 %1711
    %1713 = vadd.xlane.f32.xlu0 %v1695
    %v1714 = vpop.xlane.xlu0 %1713
    %1715 = vadd.xlane.f32.xlu0 %v1696
    %v1716 = vpop.xlane.xlu0 %1715
    %1717 = vadd.xlane.f32.xlu0 %v1697
    %v1718 = vpop.xlane.xlu0 %1717
    %1719 = vadd.xlane.f32.xlu0 %v1698
    %v1720 = vpop.xlane.xlu0 %1719
    %1721 = vadd.xlane.f32.xlu0 %v1699
    %v1722 = vpop.xlane.xlu0 %1721
    %1723 = vadd.xlane.f32.xlu0 %v1700
    %v1724 = vpop.xlane.xlu0 %1723
    %1725 = vadd.xlane.f32.xlu0 %v1701
    %v1726 = vpop.xlane.xlu0 %1725
    %1727 = vadd.xlane.f32.xlu0 %v1702
    %v1728 = vpop.xlane.xlu0 %1727
    %1729 = vadd.xlane.f32.xlu0 %v1703
    %v1730 = vpop.xlane.xlu0 %1729
    %1731 = vadd.xlane.f32.xlu0 %v1704
    %v1732 = vpop.xlane.xlu0 %1731
    %1733 = vadd.xlane.f32.xlu0 %v1705
    %v1734 = vpop.xlane.xlu0 %1733
    %1735 = vadd.xlane.f32.xlu0 %v1706
    %v1736 = vpop.xlane.xlu0 %1735
    %1737 = vadd.xlane.f32.xlu0 %v1707
    %v1738 = vpop.xlane.xlu0 %1737
    %1739 = vadd.xlane.f32.xlu0 %v1708
    %v1740 = vpop.xlane.xlu0 %1739
    %s1741 = sld [smem:[#allocation2]]
    %v1742 = vstv %s1741
    %v1743 = vadd.f32 %v1710, %v1742
    %v1744 = vadd.f32 %v1712, %v1742
    %v1745 = vadd.f32 %v1714, %v1742
    %v1746 = vadd.f32 %v1716, %v1742
    %v1747 = vadd.f32 %v1718, %v1742
    %v1748 = vadd.f32 %v1720, %v1742
    %v1749 = vadd.f32 %v1722, %v1742
    %v1750 = vadd.f32 %v1724, %v1742
    %v1751 = vadd.f32 %v1726, %v1742
    %v1752 = vadd.f32 %v1728, %v1742
    %v1753 = vadd.f32 %v1730, %v1742
    %v1754 = vadd.f32 %v1732, %v1742
    %v1755 = vadd.f32 %v1734, %v1742
    %v1756 = vadd.f32 %v1736, %v1742
    %v1757 = vadd.f32 %v1738, %v1742
    %v1758 = vadd.f32 %v1740, %v1742
    %v1775 = vlaneseq
    %v1776 = vand.u32 %v1775, 127
    %v1777 = vperm.slane %v1743, %v1776
    %v1778 = vadd.s32 %v1776, 4294967288
    %v1779 = vperm.slane %v1744, %v1778
    %vm1780 = vcmask 130112
    %v1781 = vsel %vm1780, %v1779, %v1777
    %v1782 = vadd.s32 %v1776, 4294967280
    %v1783 = vperm.slane %v1745, %v1782
    %vm1784 = vcmask 195712
    %v1785 = vsel %vm1784, %v1783, %v1781
    %v1786 = vadd.s32 %v1776, 4294967272
    %v1787 = vperm.slane %v1746, %v1786
    %vm1788 = vcmask 261312
    %v1789 = vsel %vm1788, %v1787, %v1785
    %v1790 = vadd.s32 %v1776, 4294967264
    %v1791 = vperm.slane %v1747, %v1790
    %vm1792 = vcmask 326912
    %v1793 = vsel %vm1792, %v1791, %v1789
    %v1794 = vadd.s32 %v1776, 4294967256
    %v1795 = vperm.slane %v1748, %v1794
    %vm1796 = vcmask 392512
    %v1797 = vsel %vm1796, %v1795, %v1793
    %v1798 = vadd.s32 %v1776, 4294967248
    %v1799 = vperm.slane %v1749, %v1798
    %vm1800 = vcmask 458112
    %v1801 = vsel %vm1800, %v1799, %v1797
    %v1802 = vadd.s32 %v1776, 4294967240
    %v1803 = vperm.slane %v1750, %v1802
    %vm1804 = vcmask 523712
    %v1805 = vsel %vm1804, %v1803, %v1801
    %v1806 = vadd.s32 %v1776, 4294967232
    %v1807 = vperm.slane %v1751, %v1806
    %vm1808 = vcmask 589312
    %v1809 = vsel %vm1808, %v1807, %v1805
    %v1810 = vadd.s32 %v1776, 4294967224
    %v1811 = vperm.slane %v1752, %v1810
    %vm1812 = vcmask 654912
    %v1813 = vsel %vm1812, %v1811, %v1809
    %v1814 = vadd.s32 %v1776, 4294967216
    %v1815 = vperm.slane %v1753, %v1814
    %vm1816 = vcmask 720512
    %v1817 = vsel %vm1816, %v1815, %v1813
    %v1818 = vadd.s32 %v1776, 4294967208
    %v1819 = vperm.slane %v1754, %v1818
    %vm1820 = vcmask 786112
    %v1821 = vsel %vm1820, %v1819, %v1817
    %v1822 = vadd.s32 %v1776, 4294967200
    %v1823 = vperm.slane %v1755, %v1822
    %vm1824 = vcmask 851712
    %v1825 = vsel %vm1824, %v1823, %v1821
    %v1826 = vadd.s32 %v1776, 4294967192
    %v1827 = vperm.slane %v1756, %v1826
    %vm1828 = vcmask 917312
    %v1829 = vsel %vm1828, %v1827, %v1825
    %v1830 = vadd.s32 %v1776, 4294967184
    %v1831 = vperm.slane %v1757, %v1830
    %vm1832 = vcmask 982912
    %v1833 = vsel %vm1832, %v1831, %v1829
    %v1834 = vadd.s32 %v1776, 4294967176
    %v1835 = vperm.slane %v1758, %v1834
    %vm1836 = vcmask 1048512
    %v1837 = vsel %vm1836, %v1835, %v1833
    %1839 = vst [vmem:[#allocation8] sm:$0x1] %v1837
    // Predicated region
    $region30: #{tpu_custom_call.1} parent=1 // pred_check
      _
    $region31: #{tpu_custom_call.1} parent=1 // pred_check_branch
      %1841 = sbr.rel (0) target = $region33
    $region32: #{tpu_custom_call.1} parent=1 // pred_region
      %1843 = vsyncadd [#allocation5], 0
      %s1845 = sshll.u32 [#allocation8], 4
      %s1846 = int_to_ptr.vmem [resolvable:$true] %s1845
      %s1847 = sshll.u32 %s5, 4
      %s1848 = int_to_ptr.hbm [resolvable:$true] %s1847
      %1850 = dma.vmem_to_hbm [thread:$0]  %s1846, 16, %s1848, [#allocation5]
    $region33: #{tpu_custom_call.1} parent=1 // pred_fallthru
      _
    // Predicated region
    $region34: #{tpu_custom_call.1} parent=1 // pred_check
      _
    $region35: #{tpu_custom_call.1} parent=1 // pred_check_branch
      %1852 = sbr.rel (0) target = $region37
    $region36: #{tpu_custom_call.1} parent=1 // pred_region
      %1854 = dma.done [#allocation5], 16
    $region37: #{tpu_custom_call.1} parent=1 // pred_fallthru
      _
    %1855 = vsyncpa [#allocation4], 1
    %1856 = vsyncpa [#allocation7], 1
    %1857 = vsyncpa [#allocation5], 1

</llo_original>
